<compile_context>
chip_gen: v7x
topology: tpu7x:2x2x1
jax: 0.10.0
libtpu: 0.0.40
codegen_flags: <defaults>
</compile_context>

<pallas_src>
import functools

import jax
import jax.numpy as jnp
from jax.experimental import pallas as pl
from jax.experimental.pallas import tpu as pltpu


def _fold_upsample_weights(weight):
    """Fold the 3x3 conv weights into per-parity 2x2 effective weights.

    weight: [Cout, Cin, 3, 3]  ->  w_eff: [16, Cout, Cin]  (flat index = ((a*2+b)*2+p)*2+q)
    """
    fold = jnp.array(
        [[[1.0, 0.0, 0.0], [0.0, 1.0, 1.0]],   # parity 0: tap p=0 <- u=-1, p=1 <- u in {0,0}
         [[1.0, 1.0, 0.0], [0.0, 0.0, 1.0]]],  # parity 1: tap p=0 <- u in {0,0}, p=1 <- u=+1
        dtype=jnp.float32)
    w_eff = jnp.einsum("apu,bqv,oiuv->abpqoi", fold, fold, weight.astype(jnp.float32))
    co, ci = weight.shape[0], weight.shape[1]
    return w_eff.reshape(16, co, ci)


def upsample_conv_kernel(x_ref, w_ref, b_ref, o_ref, xpad_ref, *, H, W):
    """One batch element per grid step.

    x_ref   : VMEM (1, Cp, H*W)      flattened-spatial input
    w_ref   : VMEM (16, Cp, Cp)      folded per-parity/tap channel-mixing matrices
    b_ref   : VMEM (Cp, 1)           bias
    o_ref   : VMEM (1, 4, Cp, H*W)   four parity sub-grids (lane-dense last dim)
    xpad_ref: VMEM (Cp, H*W + 2W+2)  flat zero-padded staging buffer
    """
    Cp = x_ref.shape[1]
    HW = H * W
    base = W + 1  # left halo in the flat padded buffer

    # Stage the input into a flat zero-padded scratch so every shifted 3x3 tap is
    # a plain static lane-offset slice (no roll / concat / relayout needed).
    xpad_ref[...] = jnp.zeros(xpad_ref.shape, jnp.float32)
    xpad_ref[:, base:base + HW] = x_ref[0]

    # Boundary masks on the flattened spatial axis (computed once, shared by taps).
    idx = jax.lax.broadcasted_iota(jnp.int32, (1, HW), 1)
    col = idx % W
    row_ok = {-1: idx >= W, 0: None, 1: idx < (H - 1) * W}
    col_ok = {-1: col != 0, 0: None, 1: col != W - 1}

    def shifted_patch(dr, dc):
        d = dr * W + dc
        p = xpad_ref[:, base + d:base + d + HW]
        mask = None
        for m in (row_ok[dr], col_ok[dc]):
            if m is not None:
                mask = m if mask is None else (mask & m)
        return p if mask is None else jnp.where(mask, p, 0.0)

    # The 9 shifted patches, built once and reused by all four output parities.
    patches = {(dr, dc): shifted_patch(dr, dc)
               for dr in (-1, 0, 1) for dc in (-1, 0, 1)}

    bias = b_ref[...]               # [Cp, 1] -> broadcasts over the lane axis
    taps = ((-1, 0), (0, 1))        # row/col shift for (parity, folded tap)

    for a in range(2):
        for b in range(2):
            acc = jnp.zeros((Cp, HW), jnp.float32)
            for p in range(2):
                for q in range(2):
                    t = ((a * 2 + b) * 2 + p) * 2 + q
                    acc = acc + jnp.dot(
                        w_ref[t], patches[(taps[a][p], taps[b][q])],
                        preferred_element_type=jnp.float32)
            o_ref[0, a * 2 + b] = (acc + bias).astype(o_ref.dtype)


def upsample_forward(x, weight, bias):
    """x: [B, C, H, W] (NCHW), weight: [C, C, 3, 3] (OIHW), bias: [C]."""
    B, C, H, W = x.shape
    HW = H * W
    Cp = ((C + 7) // 8) * 8   # pad channels to a sublane multiple (no-op for C % 8 == 0)

    x_flat = x.astype(jnp.float32).reshape(B, C, HW)
    x_flat = jnp.pad(x_flat, ((0, 0), (0, Cp - C), (0, 0)))
    w_eff = _fold_upsample_weights(weight)                       # [16, C, C]
    w_eff = jnp.pad(w_eff, ((0, 0), (0, Cp - C), (0, Cp - C)))   # [16, Cp, Cp]
    bias2d = jnp.pad(bias.astype(jnp.float32), (0, Cp - C)).reshape(Cp, 1)

    cost = pl.CostEstimate(
        flops=2 * B * 16 * Cp * Cp * HW,
        transcendentals=0,
        bytes_accessed=4 * (x_flat.size + B * 4 * Cp * HW + w_eff.size + Cp),
    )

    kernel = functools.partial(upsample_conv_kernel, H=H, W=W)

    out_sub = pl.pallas_call(
        kernel,
        out_shape=jax.ShapeDtypeStruct((B, 4, Cp, HW), jnp.float32),
        grid=(B,),
        in_specs=[
            pl.BlockSpec((1, Cp, HW), lambda n: (n, 0, 0)),
            pl.BlockSpec((16, Cp, Cp), lambda n: (0, 0, 0)),
            pl.BlockSpec((Cp, 1), lambda n: (0, 0)),
        ],
        out_specs=pl.BlockSpec((1, 4, Cp, HW), lambda n: (n, 0, 0, 0)),
        scratch_shapes=[pltpu.VMEM((Cp, HW + 2 * W + 2), jnp.float32)],
        compiler_params=pltpu.CompilerParams(
            dimension_semantics=("parallel",),
            vmem_limit_bytes=32 << 20,
        ),
        cost_estimate=cost,
    )(x_flat, w_eff, bias2d)

    # TODO(synk): for very large H*W or C the whole image no longer fits VMEM;
    # add a spatial/channel grid axis (with a halo of 1 row) for production sizes.

    # Drop channel padding and interleave the four parity sub-grids:
    #   y[b, c, 2i+a, 2j+bb] = out[b, a*2+bb, c, i*W+j]   (pure layout plumbing)
    out_sub = out_sub[:, :, :C, :].reshape(B, 2, 2, C, H, W)
    y = out_sub.transpose(0, 3, 4, 1, 5, 2).reshape(B, C, 2 * H, 2 * W)
    return y


def reference_upsample(x, weight, bias):
    """Pure-JAX reference: nearest 2x upsample + 3x3 'same' conv (PyTorch semantics)."""
    up = jnp.repeat(jnp.repeat(x, 2, axis=2), 2, axis=3)
    y = jax.lax.conv_general_dilated(
        up, weight, window_strides=(1, 1), padding=((1, 1), (1, 1)),
        dimension_numbers=("NCHW", "OIHW", "NCHW"))
    return y + bias[None, :, None, None]


if __name__ == "__main__":
    key = jax.random.PRNGKey(0)
    kx, kw, kb = jax.random.split(key, 3)

    B, C, H, W = 2, 4, 16, 16
    x = jax.random.normal(kx, (B, C, H, W), jnp.float32)

    # nn.Conv2d-style init: uniform(+-1/sqrt(fan_in)), fan_in = C * 3 * 3
    lim = 1.0 / jnp.sqrt(jnp.float32(C * 9))
    weight = jax.random.uniform(kw, (C, C, 3, 3), jnp.float32, -lim, lim)
    bias = jax.random.uniform(kb, (C,), jnp.float32, -lim, lim)

    out = upsample_forward(x, weight, bias)
    out = jax.block_until_ready(out)

    ref = reference_upsample(x, weight, bias)
    assert out.shape == (B, C, 2 * H, 2 * W)
    assert jnp.allclose(out, ref, atol=1e-4, rtol=1e-4), "mismatch vs reference"

    print("KERNEL_OK")
</pallas_src>

<mosaic_0001>
module attributes {stable_mosaic.version = 11 : i64} {
  func.func @upsample_conv_kernel(%arg0: i32, %arg1: memref<1x8x256xf32, #tpu.memory_space<vmem>>, %arg2: memref<16x8x8xf32, #tpu.memory_space<vmem>>, %arg3: memref<8x1xf32, #tpu.memory_space<vmem>>, %arg4: memref<1x4x8x256xf32, #tpu.memory_space<vmem>>, %arg5: memref<8x290xf32, #tpu.memory_space<vmem>>) attributes {dimension_semantics = [#tpu.dimension_semantics<parallel>], iteration_bounds = array<i64: 2>, scalar_prefetch = 0 : i64, scratch_operands = 1 : i64, tpu.core_type = #tpu.core_type<tc>, window_params = [{transform_indices = @transform_0, window_bounds = array<i64: 1, 8, 256>}, {pipeline_mode = #tpu.pipeline_mode<synchronous>, transform_indices = @transform_1, window_bounds = array<i64: 16, 8, 8>}, {pipeline_mode = #tpu.pipeline_mode<synchronous>, transform_indices = @transform_2, window_bounds = array<i64: 8, 1>}, {transform_indices = @transform_3, window_bounds = array<i64: 1, 4, 8, 256>}]} {
    %cst = arith.constant 0.000000e+00 : f32
    %0 = vector.broadcast %cst : f32 to vector<8x290xf32>
    %c0 = arith.constant 0 : index
    %c0_0 = arith.constant 0 : index
    %1 = vector.load %arg5[%c0, %c0_0] : memref<8x290xf32, #tpu.memory_space<vmem>>, vector<8x290xf32>
    tpu.vector_store %arg5[%c0, %c0_0], %0 {strides = array<i32>} : memref<8x290xf32, #tpu.memory_space<vmem>>, vector<8x290xf32>,
    %c0_1 = arith.constant 0 : index
    %c0_2 = arith.constant 0 : index
    %c0_3 = arith.constant 0 : index
    %2 = vector.load %arg1[%c0_1, %c0_2, %c0_3] : memref<1x8x256xf32, #tpu.memory_space<vmem>>, vector<1x8x256xf32>
    %3 = vector.shape_cast %2 : vector<1x8x256xf32> to vector<8x256xf32>
    %c0_4 = arith.constant 0 : index
    %c17 = arith.constant 17 : index
    %4 = vector.load %arg5[%c0_4, %c17] : memref<8x290xf32, #tpu.memory_space<vmem>>, vector<8x256xf32>
    tpu.vector_store %arg5[%c0_4, %c17], %3 {strides = array<i32>} : memref<8x290xf32, #tpu.memory_space<vmem>>, vector<8x256xf32>,
    %5 = tpu.iota {dimensions = array<i32: 1>} : vector<1x256xi32>
    %c16_i32 = arith.constant 16 : i32
    %c0_i32 = arith.constant 0 : i32
    %6 = arith.cmpi eq, %c16_i32, %c0_i32 : i32
    %c1_i32 = arith.constant 1 : i32
    %7 = arith.select %6, %c1_i32, %c16_i32 : i32
    %8 = vector.broadcast %7 : i32 to vector<1x256xi32>
    %9 = arith.remsi %5, %8 : vector<1x256xi32>
    %c0_i32_5 = arith.constant 0 : i32
    %10 = vector.broadcast %c0_i32_5 : i32 to vector<1x256xi32>
    %11 = arith.cmpi ne, %9, %10 : vector<1x256xi32>
    %c0_i32_6 = arith.constant 0 : i32
    %12 = vector.broadcast %c0_i32_6 : i32 to vector<1x256xi32>
    %13 = arith.cmpi slt, %9, %12 : vector<1x256xi32>
    %c0_i32_7 = arith.constant 0 : i32
    %14 = arith.cmpi slt, %7, %c0_i32_7 : i32
    %15 = vector.broadcast %14 : i1 to vector<1x256xi1>
    %16 = vector.broadcast %15 : vector<1x256xi1> to vector<1x256xi1>
    %17 = arith.xori %13, %16 : vector<1x256xi1>
    %18 = arith.andi %17, %11 : vector<1x256xi1>
    %19 = vector.broadcast %7 : i32 to vector<1x256xi32>
    %20 = arith.addi %9, %19 : vector<1x256xi32>
    %21 = arith.select %18, %20, %9 : vector<1x256xi1>, vector<1x256xi32>
    %c16_i32_8 = arith.constant 16 : i32
    %22 = vector.broadcast %c16_i32_8 : i32 to vector<1x256xi32>
    %23 = arith.cmpi sge, %5, %22 : vector<1x256xi32>
    %c240_i32 = arith.constant 240 : i32
    %24 = vector.broadcast %c240_i32 : i32 to vector<1x256xi32>
    %25 = arith.cmpi slt, %5, %24 : vector<1x256xi32>
    %c0_i32_9 = arith.constant 0 : i32
    %26 = vector.broadcast %c0_i32_9 : i32 to vector<1x256xi32>
    %27 = arith.cmpi ne, %21, %26 : vector<1x256xi32>
    %c15_i32 = arith.constant 15 : i32
    %28 = vector.broadcast %c15_i32 : i32 to vector<1x256xi32>
    %29 = arith.cmpi ne, %21, %28 : vector<1x256xi32>
    %c0_10 = arith.constant 0 : index
    %c0_11 = arith.constant 0 : index
    %30 = vector.load %arg5[%c0_10, %c0_11] : memref<8x290xf32, #tpu.memory_space<vmem>>, vector<8x256xf32>
    %31 = arith.andi %23, %27 : vector<1x256xi1>
    %cst_12 = arith.constant 0.000000e+00 : f32
    %32 = vector.shape_cast %31 : vector<1x256xi1> to vector<1x256xi1>
    %33 = vector.broadcast %32 : vector<1x256xi1> to vector<8x256xi1>
    %34 = vector.broadcast %cst_12 : f32 to vector<8x256xf32>
    %35 = arith.select %33, %30, %34 : vector<8x256xi1>, vector<8x256xf32>
    %c0_13 = arith.constant 0 : index
    %c1 = arith.constant 1 : index
    %36 = vector.load %arg5[%c0_13, %c1] : memref<8x290xf32, #tpu.memory_space<vmem>>, vector<8x256xf32>
    %cst_14 = arith.constant 0.000000e+00 : f32
    %37 = vector.shape_cast %23 : vector<1x256xi1> to vector<1x256xi1>
    %38 = vector.broadcast %37 : vector<1x256xi1> to vector<8x256xi1>
    %39 = vector.broadcast %cst_14 : f32 to vector<8x256xf32>
    %40 = arith.select %38, %36, %39 : vector<8x256xi1>, vector<8x256xf32>
    %c0_15 = arith.constant 0 : index
    %c2 = arith.constant 2 : index
    %41 = vector.load %arg5[%c0_15, %c2] : memref<8x290xf32, #tpu.memory_space<vmem>>, vector<8x256xf32>
    %42 = arith.andi %23, %29 : vector<1x256xi1>
    %cst_16 = arith.constant 0.000000e+00 : f32
    %43 = vector.shape_cast %42 : vector<1x256xi1> to vector<1x256xi1>
    %44 = vector.broadcast %43 : vector<1x256xi1> to vector<8x256xi1>
    %45 = vector.broadcast %cst_16 : f32 to vector<8x256xf32>
    %46 = arith.select %44, %41, %45 : vector<8x256xi1>, vector<8x256xf32>
    %c0_17 = arith.constant 0 : index
    %c16 = arith.constant 16 : index
    %47 = vector.load %arg5[%c0_17, %c16] : memref<8x290xf32, #tpu.memory_space<vmem>>, vector<8x256xf32>
    %cst_18 = arith.constant 0.000000e+00 : f32
    %48 = vector.shape_cast %27 : vector<1x256xi1> to vector<1x256xi1>
    %49 = vector.broadcast %48 : vector<1x256xi1> to vector<8x256xi1>
    %50 = vector.broadcast %cst_18 : f32 to vector<8x256xf32>
    %51 = arith.select %49, %47, %50 : vector<8x256xi1>, vector<8x256xf32>
    %c0_19 = arith.constant 0 : index
    %c17_20 = arith.constant 17 : index
    %52 = vector.load %arg5[%c0_19, %c17_20] : memref<8x290xf32, #tpu.memory_space<vmem>>, vector<8x256xf32>
    %c0_21 = arith.constant 0 : index
    %c18 = arith.constant 18 : index
    %53 = vector.load %arg5[%c0_21, %c18] : memref<8x290xf32, #tpu.memory_space<vmem>>, vector<8x256xf32>
    %cst_22 = arith.constant 0.000000e+00 : f32
    %54 = vector.shape_cast %29 : vector<1x256xi1> to vector<1x256xi1>
    %55 = vector.broadcast %54 : vector<1x256xi1> to vector<8x256xi1>
    %56 = vector.broadcast %cst_22 : f32 to vector<8x256xf32>
    %57 = arith.select %55, %53, %56 : vector<8x256xi1>, vector<8x256xf32>
    %c0_23 = arith.constant 0 : index
    %c32 = arith.constant 32 : index
    %58 = vector.load %arg5[%c0_23, %c32] : memref<8x290xf32, #tpu.memory_space<vmem>>, vector<8x256xf32>
    %59 = arith.andi %25, %27 : vector<1x256xi1>
    %cst_24 = arith.constant 0.000000e+00 : f32
    %60 = vector.shape_cast %59 : vector<1x256xi1> to vector<1x256xi1>
    %61 = vector.broadcast %60 : vector<1x256xi1> to vector<8x256xi1>
    %62 = vector.broadcast %cst_24 : f32 to vector<8x256xf32>
    %63 = arith.select %61, %58, %62 : vector<8x256xi1>, vector<8x256xf32>
    %c0_25 = arith.constant 0 : index
    %c33 = arith.constant 33 : index
    %64 = vector.load %arg5[%c0_25, %c33] : memref<8x290xf32, #tpu.memory_space<vmem>>, vector<8x256xf32>
    %cst_26 = arith.constant 0.000000e+00 : f32
    %65 = vector.shape_cast %25 : vector<1x256xi1> to vector<1x256xi1>
    %66 = vector.broadcast %65 : vector<1x256xi1> to vector<8x256xi1>
    %67 = vector.broadcast %cst_26 : f32 to vector<8x256xf32>
    %68 = arith.select %66, %64, %67 : vector<8x256xi1>, vector<8x256xf32>
    %c0_27 = arith.constant 0 : index
    %c34 = arith.constant 34 : index
    %69 = vector.load %arg5[%c0_27, %c34] : memref<8x290xf32, #tpu.memory_space<vmem>>, vector<8x256xf32>
    %70 = arith.andi %25, %29 : vector<1x256xi1>
    %cst_28 = arith.constant 0.000000e+00 : f32
    %71 = vector.shape_cast %70 : vector<1x256xi1> to vector<1x256xi1>
    %72 = vector.broadcast %71 : vector<1x256xi1> to vector<8x256xi1>
    %73 = vector.broadcast %cst_28 : f32 to vector<8x256xf32>
    %74 = arith.select %72, %69, %73 : vector<8x256xi1>, vector<8x256xf32>
    %c0_29 = arith.constant 0 : index
    %c0_30 = arith.constant 0 : index
    %75 = vector.load %arg3[%c0_29, %c0_30] : memref<8x1xf32, #tpu.memory_space<vmem>>, vector<8x1xf32>
    %cst_31 = arith.constant 0.000000e+00 : f32
    %76 = vector.broadcast %cst_31 : f32 to vector<8x256xf32>
    %c0_32 = arith.constant 0 : index
    %c0_33 = arith.constant 0 : index
    %c0_34 = arith.constant 0 : index
    %77 = vector.load %arg2[%c0_32, %c0_33, %c0_34] : memref<16x8x8xf32, #tpu.memory_space<vmem>>, vector<1x8x8xf32>
    %78 = vector.shape_cast %77 : vector<1x8x8xf32> to vector<8x8xf32>
    %cst_35 = arith.constant dense<0.000000e+00> : vector<8x256xf32>
    %79 = tpu.matmul %78, %35, %cst_35 {dimension_numbers = #tpu.dot_dimension_numbers<[1], [0], [0], [1], [0, 0, 1, 1], [], []>} : vector<8x8xf32>, vector<8x256xf32>, vector<8x256xf32> -> vector<8x256xf32>
    %80 = arith.addf %76, %79 : vector<8x256xf32>
    %c1_36 = arith.constant 1 : index
    %c0_37 = arith.constant 0 : index
    %c0_38 = arith.constant 0 : index
    %81 = vector.load %arg2[%c1_36, %c0_37, %c0_38] : memref<16x8x8xf32, #tpu.memory_space<vmem>>, vector<1x8x8xf32>
    %82 = vector.shape_cast %81 : vector<1x8x8xf32> to vector<8x8xf32>
    %cst_39 = arith.constant dense<0.000000e+00> : vector<8x256xf32>
    %83 = tpu.matmul %82, %40, %cst_39 {dimension_numbers = #tpu.dot_dimension_numbers<[1], [0], [0], [1], [0, 0, 1, 1], [], []>} : vector<8x8xf32>, vector<8x256xf32>, vector<8x256xf32> -> vector<8x256xf32>
    %84 = arith.addf %80, %83 : vector<8x256xf32>
    %c2_40 = arith.constant 2 : index
    %c0_41 = arith.constant 0 : index
    %c0_42 = arith.constant 0 : index
    %85 = vector.load %arg2[%c2_40, %c0_41, %c0_42] : memref<16x8x8xf32, #tpu.memory_space<vmem>>, vector<1x8x8xf32>
    %86 = vector.shape_cast %85 : vector<1x8x8xf32> to vector<8x8xf32>
    %cst_43 = arith.constant dense<0.000000e+00> : vector<8x256xf32>
    %87 = tpu.matmul %86, %51, %cst_43 {dimension_numbers = #tpu.dot_dimension_numbers<[1], [0], [0], [1], [0, 0, 1, 1], [], []>} : vector<8x8xf32>, vector<8x256xf32>, vector<8x256xf32> -> vector<8x256xf32>
    %88 = arith.addf %84, %87 : vector<8x256xf32>
    %c3 = arith.constant 3 : index
    %c0_44 = arith.constant 0 : index
    %c0_45 = arith.constant 0 : index
    %89 = vector.load %arg2[%c3, %c0_44, %c0_45] : memref<16x8x8xf32, #tpu.memory_space<vmem>>, vector<1x8x8xf32>
    %90 = vector.shape_cast %89 : vector<1x8x8xf32> to vector<8x8xf32>
    %cst_46 = arith.constant dense<0.000000e+00> : vector<8x256xf32>
    %91 = tpu.matmul %90, %52, %cst_46 {dimension_numbers = #tpu.dot_dimension_numbers<[1], [0], [0], [1], [0, 0, 1, 1], [], []>} : vector<8x8xf32>, vector<8x256xf32>, vector<8x256xf32> -> vector<8x256xf32>
    %92 = arith.addf %88, %91 : vector<8x256xf32>
    %93 = vector.broadcast %75 : vector<8x1xf32> to vector<8x256xf32>
    %94 = arith.addf %92, %93 : vector<8x256xf32>
    %c0_47 = arith.constant 0 : index
    %c0_48 = arith.constant 0 : index
    %c0_49 = arith.constant 0 : index
    %c0_50 = arith.constant 0 : index
    %95 = vector.load %arg4[%c0_47, %c0_48, %c0_49, %c0_50] : memref<1x4x8x256xf32, #tpu.memory_space<vmem>>, vector<1x1x8x256xf32>
    %96 = vector.shape_cast %95 : vector<1x1x8x256xf32> to vector<8x256xf32>
    %97 = vector.shape_cast %94 : vector<8x256xf32> to vector<1x1x8x256xf32>
    tpu.vector_store %arg4[%c0_47, %c0_48, %c0_49, %c0_50], %97 {strides = array<i32>} : memref<1x4x8x256xf32, #tpu.memory_space<vmem>>, vector<1x1x8x256xf32>,
    %cst_51 = arith.constant 0.000000e+00 : f32
    %98 = vector.broadcast %cst_51 : f32 to vector<8x256xf32>
    %c4 = arith.constant 4 : index
    %c0_52 = arith.constant 0 : index
    %c0_53 = arith.constant 0 : index
    %99 = vector.load %arg2[%c4, %c0_52, %c0_53] : memref<16x8x8xf32, #tpu.memory_space<vmem>>, vector<1x8x8xf32>
    %100 = vector.shape_cast %99 : vector<1x8x8xf32> to vector<8x8xf32>
    %cst_54 = arith.constant dense<0.000000e+00> : vector<8x256xf32>
    %101 = tpu.matmul %100, %40, %cst_54 {dimension_numbers = #tpu.dot_dimension_numbers<[1], [0], [0], [1], [0, 0, 1, 1], [], []>} : vector<8x8xf32>, vector<8x256xf32>, vector<8x256xf32> -> vector<8x256xf32>
    %102 = arith.addf %98, %101 : vector<8x256xf32>
    %c5 = arith.constant 5 : index
    %c0_55 = arith.constant 0 : index
    %c0_56 = arith.constant 0 : index
    %103 = vector.load %arg2[%c5, %c0_55, %c0_56] : memref<16x8x8xf32, #tpu.memory_space<vmem>>, vector<1x8x8xf32>
    %104 = vector.shape_cast %103 : vector<1x8x8xf32> to vector<8x8xf32>
    %cst_57 = arith.constant dense<0.000000e+00> : vector<8x256xf32>
    %105 = tpu.matmul %104, %46, %cst_57 {dimension_numbers = #tpu.dot_dimension_numbers<[1], [0], [0], [1], [0, 0, 1, 1], [], []>} : vector<8x8xf32>, vector<8x256xf32>, vector<8x256xf32> -> vector<8x256xf32>
    %106 = arith.addf %102, %105 : vector<8x256xf32>
    %c6 = arith.constant 6 : index
    %c0_58 = arith.constant 0 : index
    %c0_59 = arith.constant 0 : index
    %107 = vector.load %arg2[%c6, %c0_58, %c0_59] : memref<16x8x8xf32, #tpu.memory_space<vmem>>, vector<1x8x8xf32>
    %108 = vector.shape_cast %107 : vector<1x8x8xf32> to vector<8x8xf32>
    %cst_60 = arith.constant dense<0.000000e+00> : vector<8x256xf32>
    %109 = tpu.matmul %108, %52, %cst_60 {dimension_numbers = #tpu.dot_dimension_numbers<[1], [0], [0], [1], [0, 0, 1, 1], [], []>} : vector<8x8xf32>, vector<8x256xf32>, vector<8x256xf32> -> vector<8x256xf32>
    %110 = arith.addf %106, %109 : vector<8x256xf32>
    %c7 = arith.constant 7 : index
    %c0_61 = arith.constant 0 : index
    %c0_62 = arith.constant 0 : index
    %111 = vector.load %arg2[%c7, %c0_61, %c0_62] : memref<16x8x8xf32, #tpu.memory_space<vmem>>, vector<1x8x8xf32>
    %112 = vector.shape_cast %111 : vector<1x8x8xf32> to vector<8x8xf32>
    %cst_63 = arith.constant dense<0.000000e+00> : vector<8x256xf32>
    %113 = tpu.matmul %112, %57, %cst_63 {dimension_numbers = #tpu.dot_dimension_numbers<[1], [0], [0], [1], [0, 0, 1, 1], [], []>} : vector<8x8xf32>, vector<8x256xf32>, vector<8x256xf32> -> vector<8x256xf32>
    %114 = arith.addf %110, %113 : vector<8x256xf32>
    %115 = vector.broadcast %75 : vector<8x1xf32> to vector<8x256xf32>
    %116 = arith.addf %114, %115 : vector<8x256xf32>
    %c0_64 = arith.constant 0 : index
    %c1_65 = arith.constant 1 : index
    %c0_66 = arith.constant 0 : index
    %c0_67 = arith.constant 0 : index
    %117 = vector.load %arg4[%c0_64, %c1_65, %c0_66, %c0_67] : memref<1x4x8x256xf32, #tpu.memory_space<vmem>>, vector<1x1x8x256xf32>
    %118 = vector.shape_cast %117 : vector<1x1x8x256xf32> to vector<8x256xf32>
    %119 = vector.shape_cast %116 : vector<8x256xf32> to vector<1x1x8x256xf32>
    tpu.vector_store %arg4[%c0_64, %c1_65, %c0_66, %c0_67], %119 {strides = array<i32>} : memref<1x4x8x256xf32, #tpu.memory_space<vmem>>, vector<1x1x8x256xf32>,
    %cst_68 = arith.constant 0.000000e+00 : f32
    %120 = vector.broadcast %cst_68 : f32 to vector<8x256xf32>
    %c8 = arith.constant 8 : index
    %c0_69 = arith.constant 0 : index
    %c0_70 = arith.constant 0 : index
    %121 = vector.load %arg2[%c8, %c0_69, %c0_70] : memref<16x8x8xf32, #tpu.memory_space<vmem>>, vector<1x8x8xf32>
    %122 = vector.shape_cast %121 : vector<1x8x8xf32> to vector<8x8xf32>
    %cst_71 = arith.constant dense<0.000000e+00> : vector<8x256xf32>
    %123 = tpu.matmul %122, %51, %cst_71 {dimension_numbers = #tpu.dot_dimension_numbers<[1], [0], [0], [1], [0, 0, 1, 1], [], []>} : vector<8x8xf32>, vector<8x256xf32>, vector<8x256xf32> -> vector<8x256xf32>
    %124 = arith.addf %120, %123 : vector<8x256xf32>
    %c9 = arith.constant 9 : index
    %c0_72 = arith.constant 0 : index
    %c0_73 = arith.constant 0 : index
    %125 = vector.load %arg2[%c9, %c0_72, %c0_73] : memref<16x8x8xf32, #tpu.memory_space<vmem>>, vector<1x8x8xf32>
    %126 = vector.shape_cast %125 : vector<1x8x8xf32> to vector<8x8xf32>
    %cst_74 = arith.constant dense<0.000000e+00> : vector<8x256xf32>
    %127 = tpu.matmul %126, %52, %cst_74 {dimension_numbers = #tpu.dot_dimension_numbers<[1], [0], [0], [1], [0, 0, 1, 1], [], []>} : vector<8x8xf32>, vector<8x256xf32>, vector<8x256xf32> -> vector<8x256xf32>
    %128 = arith.addf %124, %127 : vector<8x256xf32>
    %c10 = arith.constant 10 : index
    %c0_75 = arith.constant 0 : index
    %c0_76 = arith.constant 0 : index
    %129 = vector.load %arg2[%c10, %c0_75, %c0_76] : memref<16x8x8xf32, #tpu.memory_space<vmem>>, vector<1x8x8xf32>
    %130 = vector.shape_cast %129 : vector<1x8x8xf32> to vector<8x8xf32>
    %cst_77 = arith.constant dense<0.000000e+00> : vector<8x256xf32>
    %131 = tpu.matmul %130, %63, %cst_77 {dimension_numbers = #tpu.dot_dimension_numbers<[1], [0], [0], [1], [0, 0, 1, 1], [], []>} : vector<8x8xf32>, vector<8x256xf32>, vector<8x256xf32> -> vector<8x256xf32>
    %132 = arith.addf %128, %131 : vector<8x256xf32>
    %c11 = arith.constant 11 : index
    %c0_78 = arith.constant 0 : index
    %c0_79 = arith.constant 0 : index
    %133 = vector.load %arg2[%c11, %c0_78, %c0_79] : memref<16x8x8xf32, #tpu.memory_space<vmem>>, vector<1x8x8xf32>
    %134 = vector.shape_cast %133 : vector<1x8x8xf32> to vector<8x8xf32>
    %cst_80 = arith.constant dense<0.000000e+00> : vector<8x256xf32>
    %135 = tpu.matmul %134, %68, %cst_80 {dimension_numbers = #tpu.dot_dimension_numbers<[1], [0], [0], [1], [0, 0, 1, 1], [], []>} : vector<8x8xf32>, vector<8x256xf32>, vector<8x256xf32> -> vector<8x256xf32>
    %136 = arith.addf %132, %135 : vector<8x256xf32>
    %137 = vector.broadcast %75 : vector<8x1xf32> to vector<8x256xf32>
    %138 = arith.addf %136, %137 : vector<8x256xf32>
    %c0_81 = arith.constant 0 : index
    %c2_82 = arith.constant 2 : index
    %c0_83 = arith.constant 0 : index
    %c0_84 = arith.constant 0 : index
    %139 = vector.load %arg4[%c0_81, %c2_82, %c0_83, %c0_84] : memref<1x4x8x256xf32, #tpu.memory_space<vmem>>, vector<1x1x8x256xf32>
    %140 = vector.shape_cast %139 : vector<1x1x8x256xf32> to vector<8x256xf32>
    %141 = vector.shape_cast %138 : vector<8x256xf32> to vector<1x1x8x256xf32>
    tpu.vector_store %arg4[%c0_81, %c2_82, %c0_83, %c0_84], %141 {strides = array<i32>} : memref<1x4x8x256xf32, #tpu.memory_space<vmem>>, vector<1x1x8x256xf32>,
    %cst_85 = arith.constant 0.000000e+00 : f32
    %142 = vector.broadcast %cst_85 : f32 to vector<8x256xf32>
    %c12 = arith.constant 12 : index
    %c0_86 = arith.constant 0 : index
    %c0_87 = arith.constant 0 : index
    %143 = vector.load %arg2[%c12, %c0_86, %c0_87] : memref<16x8x8xf32, #tpu.memory_space<vmem>>, vector<1x8x8xf32>
    %144 = vector.shape_cast %143 : vector<1x8x8xf32> to vector<8x8xf32>
    %cst_88 = arith.constant dense<0.000000e+00> : vector<8x256xf32>
    %145 = tpu.matmul %144, %52, %cst_88 {dimension_numbers = #tpu.dot_dimension_numbers<[1], [0], [0], [1], [0, 0, 1, 1], [], []>} : vector<8x8xf32>, vector<8x256xf32>, vector<8x256xf32> -> vector<8x256xf32>
    %146 = arith.addf %142, %145 : vector<8x256xf32>
    %c13 = arith.constant 13 : index
    %c0_89 = arith.constant 0 : index
    %c0_90 = arith.constant 0 : index
    %147 = vector.load %arg2[%c13, %c0_89, %c0_90] : memref<16x8x8xf32, #tpu.memory_space<vmem>>, vector<1x8x8xf32>
    %148 = vector.shape_cast %147 : vector<1x8x8xf32> to vector<8x8xf32>
    %cst_91 = arith.constant dense<0.000000e+00> : vector<8x256xf32>
    %149 = tpu.matmul %148, %57, %cst_91 {dimension_numbers = #tpu.dot_dimension_numbers<[1], [0], [0], [1], [0, 0, 1, 1], [], []>} : vector<8x8xf32>, vector<8x256xf32>, vector<8x256xf32> -> vector<8x256xf32>
    %150 = arith.addf %146, %149 : vector<8x256xf32>
    %c14 = arith.constant 14 : index
    %c0_92 = arith.constant 0 : index
    %c0_93 = arith.constant 0 : index
    %151 = vector.load %arg2[%c14, %c0_92, %c0_93] : memref<16x8x8xf32, #tpu.memory_space<vmem>>, vector<1x8x8xf32>
    %152 = vector.shape_cast %151 : vector<1x8x8xf32> to vector<8x8xf32>
    %cst_94 = arith.constant dense<0.000000e+00> : vector<8x256xf32>
    %153 = tpu.matmul %152, %68, %cst_94 {dimension_numbers = #tpu.dot_dimension_numbers<[1], [0], [0], [1], [0, 0, 1, 1], [], []>} : vector<8x8xf32>, vector<8x256xf32>, vector<8x256xf32> -> vector<8x256xf32>
    %154 = arith.addf %150, %153 : vector<8x256xf32>
    %c15 = arith.constant 15 : index
    %c0_95 = arith.constant 0 : index
    %c0_96 = arith.constant 0 : index
    %155 = vector.load %arg2[%c15, %c0_95, %c0_96] : memref<16x8x8xf32, #tpu.memory_space<vmem>>, vector<1x8x8xf32>
    %156 = vector.shape_cast %155 : vector<1x8x8xf32> to vector<8x8xf32>
    %cst_97 = arith.constant dense<0.000000e+00> : vector<8x256xf32>
    %157 = tpu.matmul %156, %74, %cst_97 {dimension_numbers = #tpu.dot_dimension_numbers<[1], [0], [0], [1], [0, 0, 1, 1], [], []>} : vector<8x8xf32>, vector<8x256xf32>, vector<8x256xf32> -> vector<8x256xf32>
    %158 = arith.addf %154, %157 : vector<8x256xf32>
    %159 = vector.broadcast %75 : vector<8x1xf32> to vector<8x256xf32>
    %160 = arith.addf %158, %159 : vector<8x256xf32>
    %c0_98 = arith.constant 0 : index
    %c3_99 = arith.constant 3 : index
    %c0_100 = arith.constant 0 : index
    %c0_101 = arith.constant 0 : index
    %161 = vector.load %arg4[%c0_98, %c3_99, %c0_100, %c0_101] : memref<1x4x8x256xf32, #tpu.memory_space<vmem>>, vector<1x1x8x256xf32>
    %162 = vector.shape_cast %161 : vector<1x1x8x256xf32> to vector<8x256xf32>
    %163 = vector.shape_cast %160 : vector<8x256xf32> to vector<1x1x8x256xf32>
    tpu.vector_store %arg4[%c0_98, %c3_99, %c0_100, %c0_101], %163 {strides = array<i32>} : memref<1x4x8x256xf32, #tpu.memory_space<vmem>>, vector<1x1x8x256xf32>,
    return
  }
  func.func @transform_0(%arg0: i32) -> (i32, i32, i32) {
    %c0_i32 = arith.constant 0 : i32
    %c0_i32_0 = arith.constant 0 : i32
    %c0_i32_1 = arith.constant 0 : i32
    return %arg0, %c0_i32, %c0_i32_0 : i32, i32, i32
  }
  func.func @transform_1(%arg0: i32) -> (i32, i32, i32) {
    %c0_i32 = arith.constant 0 : i32
    %c0_i32_0 = arith.constant 0 : i32
    %c0_i32_1 = arith.constant 0 : i32
    %c0_i32_2 = arith.constant 0 : i32
    return %c0_i32, %c0_i32_0, %c0_i32_1 : i32, i32, i32
  }
  func.func @transform_2(%arg0: i32) -> (i32, i32) {
    %c0_i32 = arith.constant 0 : i32
    %c0_i32_0 = arith.constant 0 : i32
    %c0_i32_1 = arith.constant 0 : i32
    return %c0_i32, %c0_i32_0 : i32, i32
  }
  func.func @transform_3(%arg0: i32) -> (i32, i32, i32, i32) {
    %c0_i32 = arith.constant 0 : i32
    %c0_i32_0 = arith.constant 0 : i32
    %c0_i32_1 = arith.constant 0 : i32
    %c0_i32_2 = arith.constant 0 : i32
    return %arg0, %c0_i32, %c0_i32_0, %c0_i32_1 : i32, i32, i32, i32
  }
}

</mosaic_0001>

<llo_original>
// kernel: tpu_custom_call.1
$region0: #{tpu_custom_call.1}
  #allocation0 [shape = 'u32[]', space=smem, size = 0x4, offset = 0x4, fixed_abs, tag = 'smem constant byte address 0x4 - core index']
  #allocation1 [shape = 'u32[144,128]{1,0:T(1,128)}', space=vmem, size = 0x12000, scoped, tag = 'internal scratch']
  #allocation2 [shape = 'f32[8,290]{1,0:T(8,128)}', space=vmem, size = 0x3000, scoped, tag = 'scratch operand']
  %s0 = inlined_call_operand.vmem [shape: f32[2,8,256], index: 0, kind: input, shape index: {}]
  %s1 = inlined_call_operand.vmem [shape: f32[16,8,8], index: 1, kind: input, shape index: {}]
  %s2 = inlined_call_operand.vmem [shape: f32[8,1], index: 2, kind: input, shape index: {}]
  %s3 = inlined_call_operand.hbm [shape: f32[2,4,8,256], index: 3, kind: output, shape index: {}]
  %s4 = sld [smem:[#allocation0]]
  $region45: #{tpu_custom_call.1} parent=0
    _
  %s6 = ssub.s32 1, %s4
  %s7 = scalar_select 0, %s6, %s4
  $region1: #{tpu_custom_call.1} parent=0
    #allocation3 [shape = 'u8[65536]{0}', space=vmem, size = 0x10000, scoped, tag = 'output window, operand 0']
    #allocation4 [shape = 's32[2]{0}', space=sflag, size = 0x8, scoped, tag = 'scoped memory for tpu_custom_call.1']
    %8 = vsyncpa [#allocation4], 0
    %s9 = scalar_lea.sflag [#allocation4], 1
    %10 = vsyncpa %s9, 0
    loop: start=0, step=1, limit=4
    $region2: #{tpu_custom_call.1} parent=1 // loop_pre_header
      _
    $region3: #{tpu_custom_call.1} parent=1 // loop_header
      %s12 = sphi 0, %s16
      %p13 = scmp.ge.s32.totalorder %s12, 4
      %s22 = sphi 0, %s24
      %s25 = sphi 0, %s22
      %s26 = sphi 0, %s25
      %s42 = sphi 0, %s26
      %s46 = sphi 0, %s46
      %s48 = sphi 0, %s46
      %s49 = sphi 0, %s48
      %s63 = sphi 0, %s49
      %s67 = sphi 0, %s67
      %s69 = sphi 0, %s67
      %s70 = sphi 0, %s69
      %s84 = sphi 0, %s70
      %s90 = sphi 0, %s92
      %s93 = sphi 0, %s90
      %s94 = sphi 0, %s93
      %s110 = sphi 0, %s94
    $region4: #{tpu_custom_call.1} parent=1 // loop_header_branch
      %15 = sbr.rel (%p13) target = $region8
    $region5: #{tpu_custom_call.1} parent=1 // loop_body
      %s17 = ssub.s32 %s12, 1
      %s18 = ssub.s32 %s12, 2
      %s19 = sadd.s32 %s12, 1
      %s20 = ssub.s32 %s12, %s19
      %p21 = scmp.eq.s32.totalorder %s20, 0
      %s23 = sadd.s32 %s22, 1
      %s24 = scalar_select %p21, %s22, %s23
      %p27 = pneg %p21
      %p28 = scmp.eq.s32.totalorder %s12, 1
      %p29 = por %p27, %p28
      %p30 = scmp.ne.s32.totalorder %s22, %s25
      %p31 = scmp.eq.s32.totalorder %s12, 0
      %p32 = por %p30, %p31
      %p33 = scmp.ne.s32.totalorder %s22, %s25
      %p34 = scmp.eq.s32.totalorder %s17, 1
      %p35 = por %p33, %p34
      %p36 = scmp.ne.s32.totalorder %s25, %s26
      %p37 = scmp.eq.s32.totalorder %s17, 0
      %p38 = por %p36, %p37
      %p39 = scmp.ne.s32.totalorder %s25, %s26
      %p40 = scmp.eq.s32.totalorder %s18, 1
      %p41 = por %p39, %p40
      %p43 = scmp.ne.s32.totalorder %s26, %s42
      %p44 = scmp.eq.s32.totalorder %s18, 0
      %p45 = por %p43, %p44
      %s47 = sadd.s32 %s46, 1
      %p50 = scmp.eq.s32.totalorder %s12, 1
      %p51 = scmp.ne.s32.totalorder %s46, %s48
      %p52 = scmp.eq.s32.totalorder %s12, 0
      %p53 = por %p51, %p52
      %p54 = scmp.ne.s32.totalorder %s46, %s48
      %p55 = scmp.eq.s32.totalorder %s17, 1
      %p56 = por %p54, %p55
      %p57 = scmp.ne.s32.totalorder %s48, %s49
      %p58 = scmp.eq.s32.totalorder %s17, 0
      %p59 = por %p57, %p58
      %p60 = scmp.ne.s32.totalorder %s48, %s49
      %p61 = scmp.eq.s32.totalorder %s18, 1
      %p62 = por %p60, %p61
      %p64 = scmp.ne.s32.totalorder %s49, %s63
      %p65 = scmp.eq.s32.totalorder %s18, 0
      %p66 = por %p64, %p65
      %s68 = sadd.s32 %s67, 1
      %p71 = scmp.eq.s32.totalorder %s12, 1
      %p72 = scmp.ne.s32.totalorder %s67, %s69
      %p73 = scmp.eq.s32.totalorder %s12, 0
      %p74 = por %p72, %p73
      %p75 = scmp.ne.s32.totalorder %s67, %s69
      %p76 = scmp.eq.s32.totalorder %s17, 1
      %p77 = por %p75, %p76
      %p78 = scmp.ne.s32.totalorder %s69, %s70
      %p79 = scmp.eq.s32.totalorder %s17, 0
      %p80 = por %p78, %p79
      %p81 = scmp.ne.s32.totalorder %s69, %s70
      %p82 = scmp.eq.s32.totalorder %s18, 1
      %p83 = por %p81, %p82
      %p85 = scmp.ne.s32.totalorder %s70, %s84
      %p86 = scmp.eq.s32.totalorder %s18, 0
      %p87 = por %p85, %p86
      %s88 = ssub.s32 %s12, %s19
      %p89 = scmp.eq.s32.totalorder %s88, 0
      %s91 = sadd.s32 %s90, 1
      %s92 = scalar_select %p89, %s90, %s91
      %p95 = pneg %p89
      %p96 = scmp.eq.s32.totalorder %s12, 1
      %p97 = por %p95, %p96
      %p98 = scmp.ne.s32.totalorder %s90, %s93
      %p99 = scmp.eq.s32.totalorder %s12, 0
      %p100 = por %p98, %p99
      %p101 = scmp.ne.s32.totalorder %s90, %s93
      %p102 = scmp.eq.s32.totalorder %s17, 1
      %p103 = por %p101, %p102
      %p104 = scmp.ne.s32.totalorder %s93, %s94
      %p105 = scmp.eq.s32.totalorder %s17, 0
      %p106 = por %p104, %p105
      %p107 = scmp.ne.s32.totalorder %s93, %s94
      %p108 = scmp.eq.s32.totalorder %s18, 1
      %p109 = por %p107, %p108
      %p111 = scmp.ne.s32.totalorder %s94, %s110
      %p112 = scmp.eq.s32.totalorder %s18, 0
      %p113 = por %p111, %p112
      %p114 = scmp.le.s32.totalorder 1, %s12
      %p115 = scmp.lt.s32.totalorder %s12, 3
      %p116 = pnand %p114, %p115
      %p117 = pneg %p116
      // Predicated region
      $region9: #{tpu_custom_call.1} parent=5 // pred_check
        _
      $region10: #{tpu_custom_call.1} parent=5 // pred_check_branch
        %119 = sbr.rel (%p116) target = $region12
      $region11: #{tpu_custom_call.1} parent=5 // pred_region
        %s120 = ssub.s32 %s12, 1
        // Predicated region
        $region13: #{tpu_custom_call.1} parent=11 // pred_check
          %p121 = pneg %p59
        $region14: #{tpu_custom_call.1} parent=11 // pred_check_branch
          %123 = sbr.rel (%p121) target = $region16
        $region15: #{tpu_custom_call.1} parent=11 // pred_region
          _
        $region16: #{tpu_custom_call.1} parent=11 // pred_fallthru
          _
        // Predicated region
        $region17: #{tpu_custom_call.1} parent=11 // pred_check
          %p124 = pneg %p80
        $region18: #{tpu_custom_call.1} parent=11 // pred_check_branch
          %126 = sbr.rel (%p124) target = $region20
        $region19: #{tpu_custom_call.1} parent=11 // pred_region
          _
        $region20: #{tpu_custom_call.1} parent=11 // pred_fallthru
          _
      $region12: #{tpu_custom_call.1} parent=5 // pred_fallthru
        _
      %p127 = scmp.lt.s32.totalorder %s12, 2
      // Predicated region
      $region21: #{tpu_custom_call.1} parent=5 // pred_check
        %p128 = pneg %p127
      $region22: #{tpu_custom_call.1} parent=5 // pred_check_branch
        %130 = sbr.rel (%p128) target = $region24
      $region23: #{tpu_custom_call.1} parent=5 // pred_region
        // Predicated region
        $region25: #{tpu_custom_call.1} parent=23 // pred_check
          %p131 = pneg %p32
        $region26: #{tpu_custom_call.1} parent=23 // pred_check_branch
          %133 = sbr.rel (%p131) target = $region28
        $region27: #{tpu_custom_call.1} parent=23 // pred_region
          %p134 = scmp.lt.s32.totalorder %s12, 1
          %s135 = scalar_select %p134, %s12, 1
          %s136 = smul.addr %s135, 2
          %s137 = smul.addr %s136, 8
          %s138 = scalar_lea.vmem %s0, %s137
        $region28: #{tpu_custom_call.1} parent=23 // pred_fallthru
          _
      $region24: #{tpu_custom_call.1} parent=5 // pred_fallthru
        _
      %p139 = scmp.le.s32.totalorder 1, %s12
      %p140 = scmp.lt.s32.totalorder %s12, 3
      %p141 = pnand %p139, %p140
      %p142 = pneg %p141
      // Predicated region
      $region29: #{tpu_custom_call.1} parent=5 // pred_check
        _
      $region30: #{tpu_custom_call.1} parent=5 // pred_check_branch
        %144 = sbr.rel (%p141) target = $region32
      $region31: #{tpu_custom_call.1} parent=5 // pred_region
        %s145 = ssub.s32 %s12, 1
        %p146 = scmp.lt.s32.totalorder %s17, 1
        %s147 = scalar_select %p146, %s17, 1
        %s148 = smul.addr %s147, 2
        %s149 = smul.addr %s148, 8
        %s150 = scalar_lea.vmem %s0, %s149
        %p151 = pneg %p38
        %p152 = pneg %p35
        %p153 = pneg %p59
        %p154 = pneg %p56
        %p155 = pneg %p80
        %p156 = pneg %p77
        %p157 = pneg %p106
        %p158 = pneg %p103
        %s159 = sand.u32 %s93, 1
        %s160 = scalar_lea.sflag [#allocation4], %s159
        %s161 = sand.u32 %s93, 1
        %s162 = smul.addr %s161, 64
        %s163 = scalar_lea.vmem [#allocation3], %s162
        %p164 = scmp.lt.s32.totalorder %s17, 1
        %s165 = scalar_select %p164, %s17, 1
        %s166 = smul.addr %s165, 2
        %s167 = smul.addr %s166, 8
        %s168 = scalar_lea.vmem %s0, %s167
        %169 = vst [vmem:[#allocation2] sm:$0xff] 0.0
        %170 = vst [vmem:[#allocation2 + $0x8] sm:$0xff] 0.0
        %vm171 = vcmask 277504
        %172 = vst.msk [vmem:[#allocation2 + $0x10] sm:$0xff] %vm171, 0.0
        %v173 = vld [vmem:[%s168] sm:$0xff]
        %v174 = vld [vmem:[%s168 + $0x8] sm:$0xff]
        %177 = vrot.lane.b32.xlu0 %v173, 17
        %v178 = vpop.permute.xlu0 %177
        %179 = vrot.lane.b32.xlu0 %v174, 17
        %v180 = vpop.permute.xlu0 %179
        %vm181 = vcmask 138240
        %v182 = vsel %vm181, %v178, %v180
        %vm186 = vcmask 1047688
        %187 = vst.msk [vmem:[#allocation2] sm:$0xff] %vm186, %v178
        %188 = vst [vmem:[#allocation2 + $0x8] sm:$0xff] %v182
        %189 = vst.msk [vmem:[#allocation2 + $0x10] sm:$0xff] %vm181, %v180
        %v190 = vlaneseq
        %v191 = vand.u32 %v190, 127
        %v192 = vadd.s32 %v191, 128
        %vm193 = vcmp.lt.s32.totalorder %v191, 0
        %v194 = vsub.s32 0, %v191
        %v195 = vsel %vm193, %v194, %v191
        %v196 = vshrl.u32 %v195, 4
        %v197 = vand.u32 %v195, 15
        %v198 = vsub.s32 0, %v197
        %v199 = vsel %vm193, %v198, %v197
        %vm200 = vcmp.lt.s32.totalorder %v192, 0
        %v201 = vsub.s32 0, %v192
        %v202 = vsel %vm200, %v201, %v192
        %v203 = vshrl.u32 %v202, 4
        %v204 = vand.u32 %v202, 15
        %v205 = vsub.s32 0, %v204
        %v206 = vsel %vm200, %v205, %v204
        %vm207 = vcmp.ne.s32.totalorder %v199, 0
        %vm208 = vcmp.ne.s32.totalorder %v206, 0
        %vm209 = vcmp.lt.s32.totalorder %v199, 0
        %vm210 = vcmp.lt.s32.totalorder %v206, 0
        %vm211 = vmand %vm209, %vm207
        %vm212 = vmand %vm210, %vm208
        %v213 = vadd.s32 %v199, 16
        %v214 = vadd.s32 %v206, 16
        %v215 = vsel %vm211, %v213, %v199
        %v216 = vsel %vm212, %v214, %v206
        %vm217 = vcmp.ge.s32.totalorder %v191, 16
        %vm218 = vcmp.ge.s32.totalorder %v192, 16
        %vm219 = vcmp.lt.s32.totalorder %v191, 240
        %vm220 = vcmp.lt.s32.totalorder %v192, 240
        %vm221 = vcmp.ne.s32.totalorder %v215, 0
        %vm222 = vcmp.ne.s32.totalorder %v216, 0
        %vm223 = vcmp.ne.s32.totalorder %v215, 15
        %vm224 = vcmp.ne.s32.totalorder %v216, 15
        %v225 = vld [vmem:[#allocation2] sm:$0xff]
        %v226 = vld [vmem:[#allocation2 + $0x8] sm:$0xff]
        %vm227 = vmand %vm217, %vm221
        %vm228 = vmand %vm218, %vm222
        %v229 = vsel %vm227, 1, 0
        %v230 = vsel %vm228, 1, 0
        %vm231 = vcmp.eq.s32.totalorder %v229, 1
        %vm232 = vcmp.eq.s32.totalorder %v230, 1
        %v233 = vsel %vm231, %v225, 0.0
        %v234 = vsel %vm232, %v226, 0.0
        %v235 = vld [vmem:[#allocation2 + $0x10] sm:$0xff]
        %v236 = vsel %vm217, 1, 0
        %v237 = vsel %vm218, 1, 0
        %vm238 = vcmp.eq.s32.totalorder %v236, 1
        %vm239 = vcmp.eq.s32.totalorder %v237, 1
        %243 = vrot.lane.b32.xlu0 %v225, 127
        %v244 = vpop.permute.xlu0 %243
        %245 = vrot.lane.b32.xlu0 %v226, 127
        %v246 = vpop.permute.xlu0 %245
        %247 = vrot.lane.b32.xlu0 %v235, 127
        %v248 = vpop.permute.xlu0 %247
        %vm249 = vcmask 1039360
        %v250 = vsel %vm249, %v244, %v246
        %v251 = vsel %vm249, %v246, %v248
        %v254 = vsel %vm238, %v250, 0.0
        %v255 = vsel %vm239, %v251, 0.0
        %vm256 = vmand %vm217, %vm223
        %vm257 = vmand %vm218, %vm224
        %v258 = vsel %vm256, 1, 0
        %v259 = vsel %vm257, 1, 0
        %vm260 = vcmp.eq.s32.totalorder %v258, 1
        %vm261 = vcmp.eq.s32.totalorder %v259, 1
        %262 = vrot.lane.b32.xlu0 %v225, 126
        %v263 = vpop.permute.xlu0 %262
        %264 = vrot.lane.b32.xlu0 %v226, 126
        %v265 = vpop.permute.xlu0 %264
        %266 = vrot.lane.b32.xlu0 %v235, 126
        %v267 = vpop.permute.xlu0 %266
        %vm268 = vcmask 1031168
        %v269 = vsel %vm268, %v263, %v265
        %v270 = vsel %vm268, %v265, %v267
        %v273 = vsel %vm260, %v269, 0.0
        %v274 = vsel %vm261, %v270, 0.0
        %v275 = vsel %vm221, 1, 0
        %v276 = vsel %vm222, 1, 0
        %vm277 = vcmp.eq.s32.totalorder %v275, 1
        %vm278 = vcmp.eq.s32.totalorder %v276, 1
        %279 = vrot.lane.b32.xlu0 %v225, 112
        %v280 = vpop.permute.xlu0 %279
        %281 = vrot.lane.b32.xlu0 %v226, 112
        %v282 = vpop.permute.xlu0 %281
        %283 = vrot.lane.b32.xlu0 %v235, 112
        %v284 = vpop.permute.xlu0 %283
        %vm285 = vcmask 916480
        %v286 = vsel %vm285, %v280, %v282
        %v287 = vsel %vm285, %v282, %v284
        %v290 = vsel %vm277, %v286, 0.0
        %v291 = vsel %vm278, %v287, 0.0
        %v292 = vsel %vm223, 1, 0
        %v293 = vsel %vm224, 1, 0
        %vm294 = vcmp.eq.s32.totalorder %v292, 1
        %vm295 = vcmp.eq.s32.totalorder %v293, 1
        %296 = vrot.lane.b32.xlu0 %v225, 110
        %v297 = vpop.permute.xlu0 %296
        %298 = vrot.lane.b32.xlu0 %v226, 110
        %v299 = vpop.permute.xlu0 %298
        %300 = vrot.lane.b32.xlu0 %v235, 110
        %v301 = vpop.permute.xlu0 %300
        %vm302 = vcmask 900096
        %v303 = vsel %vm302, %v297, %v299
        %v304 = vsel %vm302, %v299, %v301
        %v307 = vsel %vm294, %v303, 0.0
        %v308 = vsel %vm295, %v304, 0.0
        %vm309 = vmand %vm219, %vm221
        %vm310 = vmand %vm220, %vm222
        %v311 = vsel %vm309, 1, 0
        %v312 = vsel %vm310, 1, 0
        %vm313 = vcmp.eq.s32.totalorder %v311, 1
        %vm314 = vcmp.eq.s32.totalorder %v312, 1
        %315 = vrot.lane.b32.xlu0 %v225, 96
        %v316 = vpop.permute.xlu0 %315
        %317 = vrot.lane.b32.xlu0 %v226, 96
        %v318 = vpop.permute.xlu0 %317
        %319 = vrot.lane.b32.xlu0 %v235, 96
        %v320 = vpop.permute.xlu0 %319
        %vm321 = vcmask 785408
        %v322 = vsel %vm321, %v316, %v318
        %v323 = vsel %vm321, %v318, %v320
        %v326 = vsel %vm313, %v322, 0.0
        %v327 = vsel %vm314, %v323, 0.0
        %v328 = vsel %vm219, 1, 0
        %v329 = vsel %vm220, 1, 0
        %vm330 = vcmp.eq.s32.totalorder %v328, 1
        %vm331 = vcmp.eq.s32.totalorder %v329, 1
        %332 = vrot.lane.b32.xlu0 %v225, 95
        %v333 = vpop.permute.xlu0 %332
        %334 = vrot.lane.b32.xlu0 %v226, 95
        %v335 = vpop.permute.xlu0 %334
        %336 = vrot.lane.b32.xlu0 %v235, 95
        %v337 = vpop.permute.xlu0 %336
        %vm338 = vcmask 777216
        %v339 = vsel %vm338, %v333, %v335
        %v340 = vsel %vm338, %v335, %v337
        %v343 = vsel %vm330, %v339, 0.0
        %v344 = vsel %vm331, %v340, 0.0
        %vm345 = vmand %vm219, %vm223
        %vm346 = vmand %vm220, %vm224
        %v347 = vsel %vm345, 1, 0
        %v348 = vsel %vm346, 1, 0
        %vm349 = vcmp.eq.s32.totalorder %v347, 1
        %vm350 = vcmp.eq.s32.totalorder %v348, 1
        %351 = vrot.lane.b32.xlu0 %v225, 94
        %v352 = vpop.permute.xlu0 %351
        %353 = vrot.lane.b32.xlu0 %v226, 94
        %v354 = vpop.permute.xlu0 %353
        %355 = vrot.lane.b32.xlu0 %v235, 94
        %v356 = vpop.permute.xlu0 %355
        %vm357 = vcmask 769024
        %v358 = vsel %vm357, %v352, %v354
        %v359 = vsel %vm357, %v354, %v356
        %v362 = vsel %vm349, %v358, 0.0
        %v363 = vsel %vm350, %v359, 0.0
        %v364 = vld [vmem:[%s2] sm:$0xff]
        %v365 = vld [vmem:[%s1] sm:$0xff]
        %s366 = scalar_lea.vmem %s1, 8
        %v367 = vld [vmem:[%s366] sm:$0xff]
        %vm368 = vcmask 64512
        %v370 = vsel %vm368, %v367, 0
        %372 = vmatprep.subr.mxu0 %v255
        %373 = vmatpush1.msra.mxu0 %v254
        %374 = vmatprep.subr.mxu0 0.0
        %375 = vmatpush1.msra.mxu0 0.0
        %376 = vmatprep.subr.mxu0 0.0
        %377 = vmatpush1.msra.mxu0 0.0
        %378 = vmatprep.subr.mxu0 0.0
        %379 = vmatpush1.msra.mxu0 0.0
        %380 = vmatprep.subr.mxu0 0.0
        %381 = vmatpush1.msra.mxu0 0.0
        %382 = vmatprep.subr.mxu0 0.0
        %383 = vmatpush1.msra.mxu0 0.0
        %384 = vmatprep.subr.mxu0 0.0
        %385 = vmatpush1.msra.mxu0 0.0
        %386 = vmatprep.subr.mxu0 0.0
        %387 = vmatpush1.msra.mxu0 0.0
        %388 = vmatprep.subr.mxu0 0.0
        %389 = vmatpush1.msra.mxu0 0.0
        %390 = vmatprep.subr.mxu0 0.0
        %391 = vmatpush1.msra.mxu0 0.0
        %392 = vmatprep.subr.mxu0 0.0
        %393 = vmatpush1.msra.mxu0 0.0
        %394 = vmatprep.subr.mxu0 0.0
        %395 = vmatpush1.msra.mxu0 0.0
        %396 = vmatprep.subr.mxu0 0.0
        %397 = vmatpush1.msra.mxu0 0.0
        %398 = vmatprep.subr.mxu0 0.0
        %399 = vmatpush1.msra.mxu0 0.0
        %400 = vmatprep.subr.mxu0 0.0
        %401 = vmatpush1.msra.mxu0 0.0
        %402 = vmatprep.subr.mxu0 0.0
        %403 = vmatpush1.msra.mxu0 0.0
        %404 = vmatprep.subr.mxu0 0.0
        %405 = vmatpush1.msra.mxu0 0.0
        %406 = vmatprep.subr.mxu0 0.0
        %407 = vmatpush1.msra.mxu0 0.0
        %408 = vmatprep.subr.mxu0 0.0
        %409 = vmatpush1.msra.mxu0 0.0
        %410 = vmatprep.subr.mxu0 0.0
        %411 = vmatpush1.msra.mxu0 0.0
        %412 = vmatprep.subr.mxu0 0.0
        %413 = vmatpush1.msra.mxu0 0.0
        %414 = vmatprep.subr.mxu0 0.0
        %415 = vmatpush1.msra.mxu0 0.0
        %416 = vmatprep.subr.mxu0 0.0
        %417 = vmatpush1.msra.mxu0 0.0
        %418 = vmatprep.subr.mxu0 0.0
        %419 = vmatpush1.msra.mxu0 0.0
        %420 = vmatprep.subr.mxu0 0.0
        %421 = vmatpush1.msra.mxu0 0.0
        %422 = vmatprep.subr.mxu0 0.0
        %423 = vmatpush1.msra.mxu0 0.0
        %424 = vmatprep.subr.mxu0 0.0
        %425 = vmatpush1.msra.mxu0 0.0
        %426 = vmatprep.subr.mxu0 0.0
        %427 = vmatpush1.msra.mxu0 0.0
        %428 = vmatprep.subr.mxu0 0.0
        %429 = vmatpush1.msra.mxu0 0.0
        %430 = vmatprep.subr.mxu0 0.0
        %431 = vmatpush1.msra.mxu0 0.0
        %432 = vmatprep.subr.mxu0 0.0
        %433 = vmatpush1.msra.mxu0 0.0
        %434 = vmatprep.subr.mxu0 0.0
        %435 = vmatpush1.msra.mxu0 0.0
        %436 = vmatprep.mubr.f32.mxu0 0.0
        %437 = vmatmul.mubr.f32.gmra.mrb[0].mxu0 %v370
        %v438 = vpop.f32.mrb[0].mxu0
        %v439 = vadd.f32 0.0, %v438
        %v440 = vpop.f32.mrb[0].mxu0
        %v441 = vadd.f32 0.0, %v440
        %442 = vdwg.mxu0
        %v444 = vsel %vm368, %v365, 0
        %446 = vmatprep.subr.mxu0 %v234
        %447 = vmatpush1.msra.mxu0 %v233
        %448 = vmatprep.subr.mxu0 0.0
        %449 = vmatpush1.msra.mxu0 0.0
        %450 = vmatprep.subr.mxu0 0.0
        %451 = vmatpush1.msra.mxu0 0.0
        %452 = vmatprep.subr.mxu0 0.0
        %453 = vmatpush1.msra.mxu0 0.0
        %454 = vmatprep.subr.mxu0 0.0
        %455 = vmatpush1.msra.mxu0 0.0
        %456 = vmatprep.subr.mxu0 0.0
        %457 = vmatpush1.msra.mxu0 0.0
        %458 = vmatprep.subr.mxu0 0.0
        %459 = vmatpush1.msra.mxu0 0.0
        %460 = vmatprep.subr.mxu0 0.0
        %461 = vmatpush1.msra.mxu0 0.0
        %462 = vmatprep.subr.mxu0 0.0
        %463 = vmatpush1.msra.mxu0 0.0
        %464 = vmatprep.subr.mxu0 0.0
        %465 = vmatpush1.msra.mxu0 0.0
        %466 = vmatprep.subr.mxu0 0.0
        %467 = vmatpush1.msra.mxu0 0.0
        %468 = vmatprep.subr.mxu0 0.0
        %469 = vmatpush1.msra.mxu0 0.0
        %470 = vmatprep.subr.mxu0 0.0
        %471 = vmatpush1.msra.mxu0 0.0
        %472 = vmatprep.subr.mxu0 0.0
        %473 = vmatpush1.msra.mxu0 0.0
        %474 = vmatprep.subr.mxu0 0.0
        %475 = vmatpush1.msra.mxu0 0.0
        %476 = vmatprep.subr.mxu0 0.0
        %477 = vmatpush1.msra.mxu0 0.0
        %478 = vmatprep.subr.mxu0 0.0
        %479 = vmatpush1.msra.mxu0 0.0
        %480 = vmatprep.subr.mxu0 0.0
        %481 = vmatpush1.msra.mxu0 0.0
        %482 = vmatprep.subr.mxu0 0.0
        %483 = vmatpush1.msra.mxu0 0.0
        %484 = vmatprep.subr.mxu0 0.0
        %485 = vmatpush1.msra.mxu0 0.0
        %486 = vmatprep.subr.mxu0 0.0
        %487 = vmatpush1.msra.mxu0 0.0
        %488 = vmatprep.subr.mxu0 0.0
        %489 = vmatpush1.msra.mxu0 0.0
        %490 = vmatprep.subr.mxu0 0.0
        %491 = vmatpush1.msra.mxu0 0.0
        %492 = vmatprep.subr.mxu0 0.0
        %493 = vmatpush1.msra.mxu0 0.0
        %494 = vmatprep.subr.mxu0 0.0
        %495 = vmatpush1.msra.mxu0 0.0
        %496 = vmatprep.subr.mxu0 0.0
        %497 = vmatpush1.msra.mxu0 0.0
        %498 = vmatprep.subr.mxu0 0.0
        %499 = vmatpush1.msra.mxu0 0.0
        %500 = vmatprep.subr.mxu0 0.0
        %501 = vmatpush1.msra.mxu0 0.0
        %502 = vmatprep.subr.mxu0 0.0
        %503 = vmatpush1.msra.mxu0 0.0
        %504 = vmatprep.subr.mxu0 0.0
        %505 = vmatpush1.msra.mxu0 0.0
        %506 = vmatprep.subr.mxu0 0.0
        %507 = vmatpush1.msra.mxu0 0.0
        %508 = vmatprep.subr.mxu0 0.0
        %509 = vmatpush1.msra.mxu0 0.0
        %510 = vmatprep.mubr.f32.mxu0 0.0
        %511 = vmatmul.mubr.f32.gmra.mrb[0].mxu0 %v444
        %v512 = vpop.f32.mrb[0].mxu0
        %v513 = vadd.f32 %v439, %v512
        %v514 = vpop.f32.mrb[0].mxu0
        %v515 = vadd.f32 %v441, %v514
        %516 = vdwg.mxu0
        %s517 = scalar_lea.vmem %s1, 16
        %v518 = vld [vmem:[%s517] sm:$0xff]
        %v520 = vsel %vm368, %v518, 0
        %522 = vmatprep.subr.mxu0 %v291
        %523 = vmatpush1.msra.mxu0 %v290
        %524 = vmatprep.subr.mxu0 0.0
        %525 = vmatpush1.msra.mxu0 0.0
        %526 = vmatprep.subr.mxu0 0.0
        %527 = vmatpush1.msra.mxu0 0.0
        %528 = vmatprep.subr.mxu0 0.0
        %529 = vmatpush1.msra.mxu0 0.0
        %530 = vmatprep.subr.mxu0 0.0
        %531 = vmatpush1.msra.mxu0 0.0
        %532 = vmatprep.subr.mxu0 0.0
        %533 = vmatpush1.msra.mxu0 0.0
        %534 = vmatprep.subr.mxu0 0.0
        %535 = vmatpush1.msra.mxu0 0.0
        %536 = vmatprep.subr.mxu0 0.0
        %537 = vmatpush1.msra.mxu0 0.0
        %538 = vmatprep.subr.mxu0 0.0
        %539 = vmatpush1.msra.mxu0 0.0
        %540 = vmatprep.subr.mxu0 0.0
        %541 = vmatpush1.msra.mxu0 0.0
        %542 = vmatprep.subr.mxu0 0.0
        %543 = vmatpush1.msra.mxu0 0.0
        %544 = vmatprep.subr.mxu0 0.0
        %545 = vmatpush1.msra.mxu0 0.0
        %546 = vmatprep.subr.mxu0 0.0
        %547 = vmatpush1.msra.mxu0 0.0
        %548 = vmatprep.subr.mxu0 0.0
        %549 = vmatpush1.msra.mxu0 0.0
        %550 = vmatprep.subr.mxu0 0.0
        %551 = vmatpush1.msra.mxu0 0.0
        %552 = vmatprep.subr.mxu0 0.0
        %553 = vmatpush1.msra.mxu0 0.0
        %554 = vmatprep.subr.mxu0 0.0
        %555 = vmatpush1.msra.mxu0 0.0
        %556 = vmatprep.subr.mxu0 0.0
        %557 = vmatpush1.msra.mxu0 0.0
        %558 = vmatprep.subr.mxu0 0.0
        %559 = vmatpush1.msra.mxu0 0.0
        %560 = vmatprep.subr.mxu0 0.0
        %561 = vmatpush1.msra.mxu0 0.0
        %562 = vmatprep.subr.mxu0 0.0
        %563 = vmatpush1.msra.mxu0 0.0
        %564 = vmatprep.subr.mxu0 0.0
        %565 = vmatpush1.msra.mxu0 0.0
        %566 = vmatprep.subr.mxu0 0.0
        %567 = vmatpush1.msra.mxu0 0.0
        %568 = vmatprep.subr.mxu0 0.0
        %569 = vmatpush1.msra.mxu0 0.0
        %570 = vmatprep.subr.mxu0 0.0
        %571 = vmatpush1.msra.mxu0 0.0
        %572 = vmatprep.subr.mxu0 0.0
        %573 = vmatpush1.msra.mxu0 0.0
        %574 = vmatprep.subr.mxu0 0.0
        %575 = vmatpush1.msra.mxu0 0.0
        %576 = vmatprep.subr.mxu0 0.0
        %577 = vmatpush1.msra.mxu0 0.0
        %578 = vmatprep.subr.mxu0 0.0
        %579 = vmatpush1.msra.mxu0 0.0
        %580 = vmatprep.subr.mxu0 0.0
        %581 = vmatpush1.msra.mxu0 0.0
        %582 = vmatprep.subr.mxu0 0.0
        %583 = vmatpush1.msra.mxu0 0.0
        %584 = vmatprep.subr.mxu0 0.0
        %585 = vmatpush1.msra.mxu0 0.0
        %586 = vmatprep.mubr.f32.mxu0 0.0
        %587 = vmatmul.mubr.f32.gmra.mrb[0].mxu0 %v520
        %v588 = vpop.f32.mrb[0].mxu0
        %v589 = vadd.f32 0.0, %v588
        %v590 = vpop.f32.mrb[0].mxu0
        %v591 = vadd.f32 0.0, %v590
        %592 = vdwg.mxu0
        %v593 = vadd.f32 %v513, %v589
        %v594 = vadd.f32 %v515, %v591
        %s595 = scalar_lea.vmem %s1, 24
        %v596 = vld [vmem:[%s595] sm:$0xff]
        %597 = vrot.lane.b32.xlu0 %v225, 111
        %v598 = vpop.permute.xlu0 %597
        %599 = vrot.lane.b32.xlu0 %v226, 111
        %v600 = vpop.permute.xlu0 %599
        %601 = vrot.lane.b32.xlu0 %v235, 111
        %v602 = vpop.permute.xlu0 %601
        %vm603 = vcmask 908288
        %v604 = vsel %vm603, %v598, %v600
        %v605 = vsel %vm603, %v600, %v602
        %v609 = vsel %vm368, %v596, 0
        %611 = vmatprep.subr.mxu0 %v605
        %612 = vmatpush1.msra.mxu0 %v604
        %613 = vmatprep.subr.mxu0 0.0
        %614 = vmatpush1.msra.mxu0 0.0
        %615 = vmatprep.subr.mxu0 0.0
        %616 = vmatpush1.msra.mxu0 0.0
        %617 = vmatprep.subr.mxu0 0.0
        %618 = vmatpush1.msra.mxu0 0.0
        %619 = vmatprep.subr.mxu0 0.0
        %620 = vmatpush1.msra.mxu0 0.0
        %621 = vmatprep.subr.mxu0 0.0
        %622 = vmatpush1.msra.mxu0 0.0
        %623 = vmatprep.subr.mxu0 0.0
        %624 = vmatpush1.msra.mxu0 0.0
        %625 = vmatprep.subr.mxu0 0.0
        %626 = vmatpush1.msra.mxu0 0.0
        %627 = vmatprep.subr.mxu0 0.0
        %628 = vmatpush1.msra.mxu0 0.0
        %629 = vmatprep.subr.mxu0 0.0
        %630 = vmatpush1.msra.mxu0 0.0
        %631 = vmatprep.subr.mxu0 0.0
        %632 = vmatpush1.msra.mxu0 0.0
        %633 = vmatprep.subr.mxu0 0.0
        %634 = vmatpush1.msra.mxu0 0.0
        %635 = vmatprep.subr.mxu0 0.0
        %636 = vmatpush1.msra.mxu0 0.0
        %637 = vmatprep.subr.mxu0 0.0
        %638 = vmatpush1.msra.mxu0 0.0
        %639 = vmatprep.subr.mxu0 0.0
        %640 = vmatpush1.msra.mxu0 0.0
        %641 = vmatprep.subr.mxu0 0.0
        %642 = vmatpush1.msra.mxu0 0.0
        %643 = vmatprep.subr.mxu0 0.0
        %644 = vmatpush1.msra.mxu0 0.0
        %645 = vmatprep.subr.mxu0 0.0
        %646 = vmatpush1.msra.mxu0 0.0
        %647 = vmatprep.subr.mxu0 0.0
        %648 = vmatpush1.msra.mxu0 0.0
        %649 = vmatprep.subr.mxu0 0.0
        %650 = vmatpush1.msra.mxu0 0.0
        %651 = vmatprep.subr.mxu0 0.0
        %652 = vmatpush1.msra.mxu0 0.0
        %653 = vmatprep.subr.mxu0 0.0
        %654 = vmatpush1.msra.mxu0 0.0
        %655 = vmatprep.subr.mxu0 0.0
        %656 = vmatpush1.msra.mxu0 0.0
        %657 = vmatprep.subr.mxu0 0.0
        %658 = vmatpush1.msra.mxu0 0.0
        %659 = vmatprep.subr.mxu0 0.0
        %660 = vmatpush1.msra.mxu0 0.0
        %661 = vmatprep.subr.mxu0 0.0
        %662 = vmatpush1.msra.mxu0 0.0
        %663 = vmatprep.subr.mxu0 0.0
        %664 = vmatpush1.msra.mxu0 0.0
        %665 = vmatprep.subr.mxu0 0.0
        %666 = vmatpush1.msra.mxu0 0.0
        %667 = vmatprep.subr.mxu0 0.0
        %668 = vmatpush1.msra.mxu0 0.0
        %669 = vmatprep.subr.mxu0 0.0
        %670 = vmatpush1.msra.mxu0 0.0
        %671 = vmatprep.subr.mxu0 0.0
        %672 = vmatpush1.msra.mxu0 0.0
        %673 = vmatprep.subr.mxu0 0.0
        %674 = vmatpush1.msra.mxu0 0.0
        %675 = vmatprep.mubr.f32.mxu0 0.0
        %676 = vmatmul.mubr.f32.gmra.mrb[0].mxu0 %v609
        %v677 = vpop.f32.mrb[0].mxu0
        %v678 = vadd.f32 0.0, %v677
        %v679 = vpop.f32.mrb[0].mxu0
        %v680 = vadd.f32 0.0, %v679
        %681 = vdwg.mxu0
        %v682 = vadd.f32 %v593, %v678
        %v683 = vadd.f32 %v594, %v680
        %685 = vset.pattern.permute.xlu0 0
        %686 = vperm.xlu0 %685, %v364
        %v687 = vpop.permute.xlu0 %686
        %v689 = vadd.f32 %v682, %v687
        %v690 = vadd.f32 %v683, %v687
        %691 = vst [vmem:[%s163] sm:$0xff] %v689
        %692 = vst [vmem:[%s163 + $0x8] sm:$0xff] %v690
        %s693 = scalar_lea.vmem %s1, 32
        %v694 = vld [vmem:[%s693] sm:$0xff]
        %s695 = scalar_lea.vmem %s1, 40
        %v696 = vld [vmem:[%s695] sm:$0xff]
        %v698 = vsel %vm368, %v696, 0
        %700 = vmatprep.subr.mxu0 %v274
        %701 = vmatpush1.msra.mxu0 %v273
        %702 = vmatprep.subr.mxu0 0.0
        %703 = vmatpush1.msra.mxu0 0.0
        %704 = vmatprep.subr.mxu0 0.0
        %705 = vmatpush1.msra.mxu0 0.0
        %706 = vmatprep.subr.mxu0 0.0
        %707 = vmatpush1.msra.mxu0 0.0
        %708 = vmatprep.subr.mxu0 0.0
        %709 = vmatpush1.msra.mxu0 0.0
        %710 = vmatprep.subr.mxu0 0.0
        %711 = vmatpush1.msra.mxu0 0.0
        %712 = vmatprep.subr.mxu0 0.0
        %713 = vmatpush1.msra.mxu0 0.0
        %714 = vmatprep.subr.mxu0 0.0
        %715 = vmatpush1.msra.mxu0 0.0
        %716 = vmatprep.subr.mxu0 0.0
        %717 = vmatpush1.msra.mxu0 0.0
        %718 = vmatprep.subr.mxu0 0.0
        %719 = vmatpush1.msra.mxu0 0.0
        %720 = vmatprep.subr.mxu0 0.0
        %721 = vmatpush1.msra.mxu0 0.0
        %722 = vmatprep.subr.mxu0 0.0
        %723 = vmatpush1.msra.mxu0 0.0
        %724 = vmatprep.subr.mxu0 0.0
        %725 = vmatpush1.msra.mxu0 0.0
        %726 = vmatprep.subr.mxu0 0.0
        %727 = vmatpush1.msra.mxu0 0.0
        %728 = vmatprep.subr.mxu0 0.0
        %729 = vmatpush1.msra.mxu0 0.0
        %730 = vmatprep.subr.mxu0 0.0
        %731 = vmatpush1.msra.mxu0 0.0
        %732 = vmatprep.subr.mxu0 0.0
        %733 = vmatpush1.msra.mxu0 0.0
        %734 = vmatprep.subr.mxu0 0.0
        %735 = vmatpush1.msra.mxu0 0.0
        %736 = vmatprep.subr.mxu0 0.0
        %737 = vmatpush1.msra.mxu0 0.0
        %738 = vmatprep.subr.mxu0 0.0
        %739 = vmatpush1.msra.mxu0 0.0
        %740 = vmatprep.subr.mxu0 0.0
        %741 = vmatpush1.msra.mxu0 0.0
        %742 = vmatprep.subr.mxu0 0.0
        %743 = vmatpush1.msra.mxu0 0.0
        %744 = vmatprep.subr.mxu0 0.0
        %745 = vmatpush1.msra.mxu0 0.0
        %746 = vmatprep.subr.mxu0 0.0
        %747 = vmatpush1.msra.mxu0 0.0
        %748 = vmatprep.subr.mxu0 0.0
        %749 = vmatpush1.msra.mxu0 0.0
        %750 = vmatprep.subr.mxu0 0.0
        %751 = vmatpush1.msra.mxu0 0.0
        %752 = vmatprep.subr.mxu0 0.0
        %753 = vmatpush1.msra.mxu0 0.0
        %754 = vmatprep.subr.mxu0 0.0
        %755 = vmatpush1.msra.mxu0 0.0
        %756 = vmatprep.subr.mxu0 0.0
        %757 = vmatpush1.msra.mxu0 0.0
        %758 = vmatprep.subr.mxu0 0.0
        %759 = vmatpush1.msra.mxu0 0.0
        %760 = vmatprep.subr.mxu0 0.0
        %761 = vmatpush1.msra.mxu0 0.0
        %762 = vmatprep.subr.mxu0 0.0
        %763 = vmatpush1.msra.mxu0 0.0
        %764 = vmatprep.mubr.f32.mxu0 0.0
        %765 = vmatmul.mubr.f32.gmra.mrb[0].mxu0 %v698
        %v766 = vpop.f32.mrb[0].mxu0
        %v767 = vadd.f32 0.0, %v766
        %v768 = vpop.f32.mrb[0].mxu0
        %v769 = vadd.f32 0.0, %v768
        %770 = vdwg.mxu0
        %v772 = vsel %vm368, %v694, 0
        %774 = vmatprep.subr.mxu0 %v255
        %775 = vmatpush1.msra.mxu0 %v254
        %776 = vmatprep.subr.mxu0 0.0
        %777 = vmatpush1.msra.mxu0 0.0
        %778 = vmatprep.subr.mxu0 0.0
        %779 = vmatpush1.msra.mxu0 0.0
        %780 = vmatprep.subr.mxu0 0.0
        %781 = vmatpush1.msra.mxu0 0.0
        %782 = vmatprep.subr.mxu0 0.0
        %783 = vmatpush1.msra.mxu0 0.0
        %784 = vmatprep.subr.mxu0 0.0
        %785 = vmatpush1.msra.mxu0 0.0
        %786 = vmatprep.subr.mxu0 0.0
        %787 = vmatpush1.msra.mxu0 0.0
        %788 = vmatprep.subr.mxu0 0.0
        %789 = vmatpush1.msra.mxu0 0.0
        %790 = vmatprep.subr.mxu0 0.0
        %791 = vmatpush1.msra.mxu0 0.0
        %792 = vmatprep.subr.mxu0 0.0
        %793 = vmatpush1.msra.mxu0 0.0
        %794 = vmatprep.subr.mxu0 0.0
        %795 = vmatpush1.msra.mxu0 0.0
        %796 = vmatprep.subr.mxu0 0.0
        %797 = vmatpush1.msra.mxu0 0.0
        %798 = vmatprep.subr.mxu0 0.0
        %799 = vmatpush1.msra.mxu0 0.0
        %800 = vmatprep.subr.mxu0 0.0
        %801 = vmatpush1.msra.mxu0 0.0
        %802 = vmatprep.subr.mxu0 0.0
        %803 = vmatpush1.msra.mxu0 0.0
        %804 = vmatprep.subr.mxu0 0.0
        %805 = vmatpush1.msra.mxu0 0.0
        %806 = vmatprep.subr.mxu0 0.0
        %807 = vmatpush1.msra.mxu0 0.0
        %808 = vmatprep.subr.mxu0 0.0
        %809 = vmatpush1.msra.mxu0 0.0
        %810 = vmatprep.subr.mxu0 0.0
        %811 = vmatpush1.msra.mxu0 0.0
        %812 = vmatprep.subr.mxu0 0.0
        %813 = vmatpush1.msra.mxu0 0.0
        %814 = vmatprep.subr.mxu0 0.0
        %815 = vmatpush1.msra.mxu0 0.0
        %816 = vmatprep.subr.mxu0 0.0
        %817 = vmatpush1.msra.mxu0 0.0
        %818 = vmatprep.subr.mxu0 0.0
        %819 = vmatpush1.msra.mxu0 0.0
        %820 = vmatprep.subr.mxu0 0.0
        %821 = vmatpush1.msra.mxu0 0.0
        %822 = vmatprep.subr.mxu0 0.0
        %823 = vmatpush1.msra.mxu0 0.0
        %824 = vmatprep.subr.mxu0 0.0
        %825 = vmatpush1.msra.mxu0 0.0
        %826 = vmatprep.subr.mxu0 0.0
        %827 = vmatpush1.msra.mxu0 0.0
        %828 = vmatprep.subr.mxu0 0.0
        %829 = vmatpush1.msra.mxu0 0.0
        %830 = vmatprep.subr.mxu0 0.0
        %831 = vmatpush1.msra.mxu0 0.0
        %832 = vmatprep.subr.mxu0 0.0
        %833 = vmatpush1.msra.mxu0 0.0
        %834 = vmatprep.subr.mxu0 0.0
        %835 = vmatpush1.msra.mxu0 0.0
        %836 = vmatprep.subr.mxu0 0.0
        %837 = vmatpush1.msra.mxu0 0.0
        %838 = vmatprep.mubr.f32.mxu0 0.0
        %839 = vmatmul.mubr.f32.gmra.mrb[0].mxu0 %v772
        %v840 = vpop.f32.mrb[0].mxu0
        %v841 = vadd.f32 %v767, %v840
        %v842 = vpop.f32.mrb[0].mxu0
        %v843 = vadd.f32 %v769, %v842
        %844 = vdwg.mxu0
        %s845 = scalar_lea.vmem %s1, 48
        %v846 = vld [vmem:[%s845] sm:$0xff]
        %v848 = vsel %vm368, %v846, 0
        %850 = vmatprep.subr.mxu0 %v605
        %851 = vmatpush1.msra.mxu0 %v604
        %852 = vmatprep.subr.mxu0 0.0
        %853 = vmatpush1.msra.mxu0 0.0
        %854 = vmatprep.subr.mxu0 0.0
        %855 = vmatpush1.msra.mxu0 0.0
        %856 = vmatprep.subr.mxu0 0.0
        %857 = vmatpush1.msra.mxu0 0.0
        %858 = vmatprep.subr.mxu0 0.0
        %859 = vmatpush1.msra.mxu0 0.0
        %860 = vmatprep.subr.mxu0 0.0
        %861 = vmatpush1.msra.mxu0 0.0
        %862 = vmatprep.subr.mxu0 0.0
        %863 = vmatpush1.msra.mxu0 0.0
        %864 = vmatprep.subr.mxu0 0.0
        %865 = vmatpush1.msra.mxu0 0.0
        %866 = vmatprep.subr.mxu0 0.0
        %867 = vmatpush1.msra.mxu0 0.0
        %868 = vmatprep.subr.mxu0 0.0
        %869 = vmatpush1.msra.mxu0 0.0
        %870 = vmatprep.subr.mxu0 0.0
        %871 = vmatpush1.msra.mxu0 0.0
        %872 = vmatprep.subr.mxu0 0.0
        %873 = vmatpush1.msra.mxu0 0.0
        %874 = vmatprep.subr.mxu0 0.0
        %875 = vmatpush1.msra.mxu0 0.0
        %876 = vmatprep.subr.mxu0 0.0
        %877 = vmatpush1.msra.mxu0 0.0
        %878 = vmatprep.subr.mxu0 0.0
        %879 = vmatpush1.msra.mxu0 0.0
        %880 = vmatprep.subr.mxu0 0.0
        %881 = vmatpush1.msra.mxu0 0.0
        %882 = vmatprep.subr.mxu0 0.0
        %883 = vmatpush1.msra.mxu0 0.0
        %884 = vmatprep.subr.mxu0 0.0
        %885 = vmatpush1.msra.mxu0 0.0
        %886 = vmatprep.subr.mxu0 0.0
        %887 = vmatpush1.msra.mxu0 0.0
        %888 = vmatprep.subr.mxu0 0.0
        %889 = vmatpush1.msra.mxu0 0.0
        %890 = vmatprep.subr.mxu0 0.0
        %891 = vmatpush1.msra.mxu0 0.0
        %892 = vmatprep.subr.mxu0 0.0
        %893 = vmatpush1.msra.mxu0 0.0
        %894 = vmatprep.subr.mxu0 0.0
        %895 = vmatpush1.msra.mxu0 0.0
        %896 = vmatprep.subr.mxu0 0.0
        %897 = vmatpush1.msra.mxu0 0.0
        %898 = vmatprep.subr.mxu0 0.0
        %899 = vmatpush1.msra.mxu0 0.0
        %900 = vmatprep.subr.mxu0 0.0
        %901 = vmatpush1.msra.mxu0 0.0
        %902 = vmatprep.subr.mxu0 0.0
        %903 = vmatpush1.msra.mxu0 0.0
        %904 = vmatprep.subr.mxu0 0.0
        %905 = vmatpush1.msra.mxu0 0.0
        %906 = vmatprep.subr.mxu0 0.0
        %907 = vmatpush1.msra.mxu0 0.0
        %908 = vmatprep.subr.mxu0 0.0
        %909 = vmatpush1.msra.mxu0 0.0
        %910 = vmatprep.subr.mxu0 0.0
        %911 = vmatpush1.msra.mxu0 0.0
        %912 = vmatprep.subr.mxu0 0.0
        %913 = vmatpush1.msra.mxu0 0.0
        %914 = vmatprep.mubr.f32.mxu0 0.0
        %915 = vmatmul.mubr.f32.gmra.mrb[0].mxu0 %v848
        %v916 = vpop.f32.mrb[0].mxu0
        %v917 = vadd.f32 0.0, %v916
        %v918 = vpop.f32.mrb[0].mxu0
        %v919 = vadd.f32 0.0, %v918
        %920 = vdwg.mxu0
        %v921 = vadd.f32 %v841, %v917
        %v922 = vadd.f32 %v843, %v919
        %s923 = scalar_lea.vmem %s1, 56
        %v924 = vld [vmem:[%s923] sm:$0xff]
        %v926 = vsel %vm368, %v924, 0
        %928 = vmatprep.subr.mxu0 %v308
        %929 = vmatpush1.msra.mxu0 %v307
        %930 = vmatprep.subr.mxu0 0.0
        %931 = vmatpush1.msra.mxu0 0.0
        %932 = vmatprep.subr.mxu0 0.0
        %933 = vmatpush1.msra.mxu0 0.0
        %934 = vmatprep.subr.mxu0 0.0
        %935 = vmatpush1.msra.mxu0 0.0
        %936 = vmatprep.subr.mxu0 0.0
        %937 = vmatpush1.msra.mxu0 0.0
        %938 = vmatprep.subr.mxu0 0.0
        %939 = vmatpush1.msra.mxu0 0.0
        %940 = vmatprep.subr.mxu0 0.0
        %941 = vmatpush1.msra.mxu0 0.0
        %942 = vmatprep.subr.mxu0 0.0
        %943 = vmatpush1.msra.mxu0 0.0
        %944 = vmatprep.subr.mxu0 0.0
        %945 = vmatpush1.msra.mxu0 0.0
        %946 = vmatprep.subr.mxu0 0.0
        %947 = vmatpush1.msra.mxu0 0.0
        %948 = vmatprep.subr.mxu0 0.0
        %949 = vmatpush1.msra.mxu0 0.0
        %950 = vmatprep.subr.mxu0 0.0
        %951 = vmatpush1.msra.mxu0 0.0
        %952 = vmatprep.subr.mxu0 0.0
        %953 = vmatpush1.msra.mxu0 0.0
        %954 = vmatprep.subr.mxu0 0.0
        %955 = vmatpush1.msra.mxu0 0.0
        %956 = vmatprep.subr.mxu0 0.0
        %957 = vmatpush1.msra.mxu0 0.0
        %958 = vmatprep.subr.mxu0 0.0
        %959 = vmatpush1.msra.mxu0 0.0
        %960 = vmatprep.subr.mxu0 0.0
        %961 = vmatpush1.msra.mxu0 0.0
        %962 = vmatprep.subr.mxu0 0.0
        %963 = vmatpush1.msra.mxu0 0.0
        %964 = vmatprep.subr.mxu0 0.0
        %965 = vmatpush1.msra.mxu0 0.0
        %966 = vmatprep.subr.mxu0 0.0
        %967 = vmatpush1.msra.mxu0 0.0
        %968 = vmatprep.subr.mxu0 0.0
        %969 = vmatpush1.msra.mxu0 0.0
        %970 = vmatprep.subr.mxu0 0.0
        %971 = vmatpush1.msra.mxu0 0.0
        %972 = vmatprep.subr.mxu0 0.0
        %973 = vmatpush1.msra.mxu0 0.0
        %974 = vmatprep.subr.mxu0 0.0
        %975 = vmatpush1.msra.mxu0 0.0
        %976 = vmatprep.subr.mxu0 0.0
        %977 = vmatpush1.msra.mxu0 0.0
        %978 = vmatprep.subr.mxu0 0.0
        %979 = vmatpush1.msra.mxu0 0.0
        %980 = vmatprep.subr.mxu0 0.0
        %981 = vmatpush1.msra.mxu0 0.0
        %982 = vmatprep.subr.mxu0 0.0
        %983 = vmatpush1.msra.mxu0 0.0
        %984 = vmatprep.subr.mxu0 0.0
        %985 = vmatpush1.msra.mxu0 0.0
        %986 = vmatprep.subr.mxu0 0.0
        %987 = vmatpush1.msra.mxu0 0.0
        %988 = vmatprep.subr.mxu0 0.0
        %989 = vmatpush1.msra.mxu0 0.0
        %990 = vmatprep.subr.mxu0 0.0
        %991 = vmatpush1.msra.mxu0 0.0
        %992 = vmatprep.mubr.f32.mxu0 0.0
        %993 = vmatmul.mubr.f32.gmra.mrb[0].mxu0 %v926
        %v994 = vpop.f32.mrb[0].mxu0
        %v995 = vadd.f32 0.0, %v994
        %v996 = vpop.f32.mrb[0].mxu0
        %v997 = vadd.f32 0.0, %v996
        %998 = vdwg.mxu0
        %v999 = vadd.f32 %v921, %v995
        %v1000 = vadd.f32 %v922, %v997
        %v1001 = vadd.f32 %v999, %v687
        %v1002 = vadd.f32 %v1000, %v687
        %s1003 = scalar_lea.vmem %s163, 16 [#allocation3]
        %1004 = vst [vmem:[%s1003] sm:$0xff] %v1001
        %1005 = vst [vmem:[%s1003 + $0x8] sm:$0xff] %v1002
        %s1006 = scalar_lea.vmem %s1, 64
        %v1007 = vld [vmem:[%s1006] sm:$0xff]
        %s1008 = scalar_lea.vmem %s1, 72
        %v1009 = vld [vmem:[%s1008] sm:$0xff]
        %v1011 = vsel %vm368, %v1009, 0
        %1013 = vmatprep.subr.mxu0 %v605
        %1014 = vmatpush1.msra.mxu0 %v604
        %1015 = vmatprep.subr.mxu0 0.0
        %1016 = vmatpush1.msra.mxu0 0.0
        %1017 = vmatprep.subr.mxu0 0.0
        %1018 = vmatpush1.msra.mxu0 0.0
        %1019 = vmatprep.subr.mxu0 0.0
        %1020 = vmatpush1.msra.mxu0 0.0
        %1021 = vmatprep.subr.mxu0 0.0
        %1022 = vmatpush1.msra.mxu0 0.0
        %1023 = vmatprep.subr.mxu0 0.0
        %1024 = vmatpush1.msra.mxu0 0.0
        %1025 = vmatprep.subr.mxu0 0.0
        %1026 = vmatpush1.msra.mxu0 0.0
        %1027 = vmatprep.subr.mxu0 0.0
        %1028 = vmatpush1.msra.mxu0 0.0
        %1029 = vmatprep.subr.mxu0 0.0
        %1030 = vmatpush1.msra.mxu0 0.0
        %1031 = vmatprep.subr.mxu0 0.0
        %1032 = vmatpush1.msra.mxu0 0.0
        %1033 = vmatprep.subr.mxu0 0.0
        %1034 = vmatpush1.msra.mxu0 0.0
        %1035 = vmatprep.subr.mxu0 0.0
        %1036 = vmatpush1.msra.mxu0 0.0
        %1037 = vmatprep.subr.mxu0 0.0
        %1038 = vmatpush1.msra.mxu0 0.0
        %1039 = vmatprep.subr.mxu0 0.0
        %1040 = vmatpush1.msra.mxu0 0.0
        %1041 = vmatprep.subr.mxu0 0.0
        %1042 = vmatpush1.msra.mxu0 0.0
        %1043 = vmatprep.subr.mxu0 0.0
        %1044 = vmatpush1.msra.mxu0 0.0
        %1045 = vmatprep.subr.mxu0 0.0
        %1046 = vmatpush1.msra.mxu0 0.0
        %1047 = vmatprep.subr.mxu0 0.0
        %1048 = vmatpush1.msra.mxu0 0.0
        %1049 = vmatprep.subr.mxu0 0.0
        %1050 = vmatpush1.msra.mxu0 0.0
        %1051 = vmatprep.subr.mxu0 0.0
        %1052 = vmatpush1.msra.mxu0 0.0
        %1053 = vmatprep.subr.mxu0 0.0
        %1054 = vmatpush1.msra.mxu0 0.0
        %1055 = vmatprep.subr.mxu0 0.0
        %1056 = vmatpush1.msra.mxu0 0.0
        %1057 = vmatprep.subr.mxu0 0.0
        %1058 = vmatpush1.msra.mxu0 0.0
        %1059 = vmatprep.subr.mxu0 0.0
        %1060 = vmatpush1.msra.mxu0 0.0
        %1061 = vmatprep.subr.mxu0 0.0
        %1062 = vmatpush1.msra.mxu0 0.0
        %1063 = vmatprep.subr.mxu0 0.0
        %1064 = vmatpush1.msra.mxu0 0.0
        %1065 = vmatprep.subr.mxu0 0.0
        %1066 = vmatpush1.msra.mxu0 0.0
        %1067 = vmatprep.subr.mxu0 0.0
        %1068 = vmatpush1.msra.mxu0 0.0
        %1069 = vmatprep.subr.mxu0 0.0
        %1070 = vmatpush1.msra.mxu0 0.0
        %1071 = vmatprep.subr.mxu0 0.0
        %1072 = vmatpush1.msra.mxu0 0.0
        %1073 = vmatprep.subr.mxu0 0.0
        %1074 = vmatpush1.msra.mxu0 0.0
        %1075 = vmatprep.subr.mxu0 0.0
        %1076 = vmatpush1.msra.mxu0 0.0
        %1077 = vmatprep.mubr.f32.mxu0 0.0
        %1078 = vmatmul.mubr.f32.gmra.mrb[0].mxu0 %v1011
        %v1079 = vpop.f32.mrb[0].mxu0
        %v1080 = vadd.f32 0.0, %v1079
        %v1081 = vpop.f32.mrb[0].mxu0
        %v1082 = vadd.f32 0.0, %v1081
        %1083 = vdwg.mxu0
        %v1085 = vsel %vm368, %v1007, 0
        %1087 = vmatprep.subr.mxu0 %v291
        %1088 = vmatpush1.msra.mxu0 %v290
        %1089 = vmatprep.subr.mxu0 0.0
        %1090 = vmatpush1.msra.mxu0 0.0
        %1091 = vmatprep.subr.mxu0 0.0
        %1092 = vmatpush1.msra.mxu0 0.0
        %1093 = vmatprep.subr.mxu0 0.0
        %1094 = vmatpush1.msra.mxu0 0.0
        %1095 = vmatprep.subr.mxu0 0.0
        %1096 = vmatpush1.msra.mxu0 0.0
        %1097 = vmatprep.subr.mxu0 0.0
        %1098 = vmatpush1.msra.mxu0 0.0
        %1099 = vmatprep.subr.mxu0 0.0
        %1100 = vmatpush1.msra.mxu0 0.0
        %1101 = vmatprep.subr.mxu0 0.0
        %1102 = vmatpush1.msra.mxu0 0.0
        %1103 = vmatprep.subr.mxu0 0.0
        %1104 = vmatpush1.msra.mxu0 0.0
        %1105 = vmatprep.subr.mxu0 0.0
        %1106 = vmatpush1.msra.mxu0 0.0
        %1107 = vmatprep.subr.mxu0 0.0
        %1108 = vmatpush1.msra.mxu0 0.0
        %1109 = vmatprep.subr.mxu0 0.0
        %1110 = vmatpush1.msra.mxu0 0.0
        %1111 = vmatprep.subr.mxu0 0.0
        %1112 = vmatpush1.msra.mxu0 0.0
        %1113 = vmatprep.subr.mxu0 0.0
        %1114 = vmatpush1.msra.mxu0 0.0
        %1115 = vmatprep.subr.mxu0 0.0
        %1116 = vmatpush1.msra.mxu0 0.0
        %1117 = vmatprep.subr.mxu0 0.0
        %1118 = vmatpush1.msra.mxu0 0.0
        %1119 = vmatprep.subr.mxu0 0.0
        %1120 = vmatpush1.msra.mxu0 0.0
        %1121 = vmatprep.subr.mxu0 0.0
        %1122 = vmatpush1.msra.mxu0 0.0
        %1123 = vmatprep.subr.mxu0 0.0
        %1124 = vmatpush1.msra.mxu0 0.0
        %1125 = vmatprep.subr.mxu0 0.0
        %1126 = vmatpush1.msra.mxu0 0.0
        %1127 = vmatprep.subr.mxu0 0.0
        %1128 = vmatpush1.msra.mxu0 0.0
        %1129 = vmatprep.subr.mxu0 0.0
        %1130 = vmatpush1.msra.mxu0 0.0
        %1131 = vmatprep.subr.mxu0 0.0
        %1132 = vmatpush1.msra.mxu0 0.0
        %1133 = vmatprep.subr.mxu0 0.0
        %1134 = vmatpush1.msra.mxu0 0.0
        %1135 = vmatprep.subr.mxu0 0.0
        %1136 = vmatpush1.msra.mxu0 0.0
        %1137 = vmatprep.subr.mxu0 0.0
        %1138 = vmatpush1.msra.mxu0 0.0
        %1139 = vmatprep.subr.mxu0 0.0
        %1140 = vmatpush1.msra.mxu0 0.0
        %1141 = vmatprep.subr.mxu0 0.0
        %1142 = vmatpush1.msra.mxu0 0.0
        %1143 = vmatprep.subr.mxu0 0.0
        %1144 = vmatpush1.msra.mxu0 0.0
        %1145 = vmatprep.subr.mxu0 0.0
        %1146 = vmatpush1.msra.mxu0 0.0
        %1147 = vmatprep.subr.mxu0 0.0
        %1148 = vmatpush1.msra.mxu0 0.0
        %1149 = vmatprep.subr.mxu0 0.0
        %1150 = vmatpush1.msra.mxu0 0.0
        %1151 = vmatprep.mubr.f32.mxu0 0.0
        %1152 = vmatmul.mubr.f32.gmra.mrb[0].mxu0 %v1085
        %v1153 = vpop.f32.mrb[0].mxu0
        %v1154 = vadd.f32 %v1080, %v1153
        %v1155 = vpop.f32.mrb[0].mxu0
        %v1156 = vadd.f32 %v1082, %v1155
        %1157 = vdwg.mxu0
        %s1158 = scalar_lea.vmem %s1, 80
        %v1159 = vld [vmem:[%s1158] sm:$0xff]
        %v1161 = vsel %vm368, %v1159, 0
        %1163 = vmatprep.subr.mxu0 %v327
        %1164 = vmatpush1.msra.mxu0 %v326
        %1165 = vmatprep.subr.mxu0 0.0
        %1166 = vmatpush1.msra.mxu0 0.0
        %1167 = vmatprep.subr.mxu0 0.0
        %1168 = vmatpush1.msra.mxu0 0.0
        %1169 = vmatprep.subr.mxu0 0.0
        %1170 = vmatpush1.msra.mxu0 0.0
        %1171 = vmatprep.subr.mxu0 0.0
        %1172 = vmatpush1.msra.mxu0 0.0
        %1173 = vmatprep.subr.mxu0 0.0
        %1174 = vmatpush1.msra.mxu0 0.0
        %1175 = vmatprep.subr.mxu0 0.0
        %1176 = vmatpush1.msra.mxu0 0.0
        %1177 = vmatprep.subr.mxu0 0.0
        %1178 = vmatpush1.msra.mxu0 0.0
        %1179 = vmatprep.subr.mxu0 0.0
        %1180 = vmatpush1.msra.mxu0 0.0
        %1181 = vmatprep.subr.mxu0 0.0
        %1182 = vmatpush1.msra.mxu0 0.0
        %1183 = vmatprep.subr.mxu0 0.0
        %1184 = vmatpush1.msra.mxu0 0.0
        %1185 = vmatprep.subr.mxu0 0.0
        %1186 = vmatpush1.msra.mxu0 0.0
        %1187 = vmatprep.subr.mxu0 0.0
        %1188 = vmatpush1.msra.mxu0 0.0
        %1189 = vmatprep.subr.mxu0 0.0
        %1190 = vmatpush1.msra.mxu0 0.0
        %1191 = vmatprep.subr.mxu0 0.0
        %1192 = vmatpush1.msra.mxu0 0.0
        %1193 = vmatprep.subr.mxu0 0.0
        %1194 = vmatpush1.msra.mxu0 0.0
        %1195 = vmatprep.subr.mxu0 0.0
        %1196 = vmatpush1.msra.mxu0 0.0
        %1197 = vmatprep.subr.mxu0 0.0
        %1198 = vmatpush1.msra.mxu0 0.0
        %1199 = vmatprep.subr.mxu0 0.0
        %1200 = vmatpush1.msra.mxu0 0.0
        %1201 = vmatprep.subr.mxu0 0.0
        %1202 = vmatpush1.msra.mxu0 0.0
        %1203 = vmatprep.subr.mxu0 0.0
        %1204 = vmatpush1.msra.mxu0 0.0
        %1205 = vmatprep.subr.mxu0 0.0
        %1206 = vmatpush1.msra.mxu0 0.0
        %1207 = vmatprep.subr.mxu0 0.0
        %1208 = vmatpush1.msra.mxu0 0.0
        %1209 = vmatprep.subr.mxu0 0.0
        %1210 = vmatpush1.msra.mxu0 0.0
        %1211 = vmatprep.subr.mxu0 0.0
        %1212 = vmatpush1.msra.mxu0 0.0
        %1213 = vmatprep.subr.mxu0 0.0
        %1214 = vmatpush1.msra.mxu0 0.0
        %1215 = vmatprep.subr.mxu0 0.0
        %1216 = vmatpush1.msra.mxu0 0.0
        %1217 = vmatprep.subr.mxu0 0.0
        %1218 = vmatpush1.msra.mxu0 0.0
        %1219 = vmatprep.subr.mxu0 0.0
        %1220 = vmatpush1.msra.mxu0 0.0
        %1221 = vmatprep.subr.mxu0 0.0
        %1222 = vmatpush1.msra.mxu0 0.0
        %1223 = vmatprep.subr.mxu0 0.0
        %1224 = vmatpush1.msra.mxu0 0.0
        %1225 = vmatprep.subr.mxu0 0.0
        %1226 = vmatpush1.msra.mxu0 0.0
        %1227 = vmatprep.mubr.f32.mxu0 0.0
        %1228 = vmatmul.mubr.f32.gmra.mrb[0].mxu0 %v1161
        %v1229 = vpop.f32.mrb[0].mxu0
        %v1230 = vadd.f32 0.0, %v1229
        %v1231 = vpop.f32.mrb[0].mxu0
        %v1232 = vadd.f32 0.0, %v1231
        %1233 = vdwg.mxu0
        %v1234 = vadd.f32 %v1154, %v1230
        %v1235 = vadd.f32 %v1156, %v1232
        %s1236 = scalar_lea.vmem %s1, 88
        %v1237 = vld [vmem:[%s1236] sm:$0xff]
        %v1239 = vsel %vm368, %v1237, 0
        %1241 = vmatprep.subr.mxu0 %v344
        %1242 = vmatpush1.msra.mxu0 %v343
        %1243 = vmatprep.subr.mxu0 0.0
        %1244 = vmatpush1.msra.mxu0 0.0
        %1245 = vmatprep.subr.mxu0 0.0
        %1246 = vmatpush1.msra.mxu0 0.0
        %1247 = vmatprep.subr.mxu0 0.0
        %1248 = vmatpush1.msra.mxu0 0.0
        %1249 = vmatprep.subr.mxu0 0.0
        %1250 = vmatpush1.msra.mxu0 0.0
        %1251 = vmatprep.subr.mxu0 0.0
        %1252 = vmatpush1.msra.mxu0 0.0
        %1253 = vmatprep.subr.mxu0 0.0
        %1254 = vmatpush1.msra.mxu0 0.0
        %1255 = vmatprep.subr.mxu0 0.0
        %1256 = vmatpush1.msra.mxu0 0.0
        %1257 = vmatprep.subr.mxu0 0.0
        %1258 = vmatpush1.msra.mxu0 0.0
        %1259 = vmatprep.subr.mxu0 0.0
        %1260 = vmatpush1.msra.mxu0 0.0
        %1261 = vmatprep.subr.mxu0 0.0
        %1262 = vmatpush1.msra.mxu0 0.0
        %1263 = vmatprep.subr.mxu0 0.0
        %1264 = vmatpush1.msra.mxu0 0.0
        %1265 = vmatprep.subr.mxu0 0.0
        %1266 = vmatpush1.msra.mxu0 0.0
        %1267 = vmatprep.subr.mxu0 0.0
        %1268 = vmatpush1.msra.mxu0 0.0
        %1269 = vmatprep.subr.mxu0 0.0
        %1270 = vmatpush1.msra.mxu0 0.0
        %1271 = vmatprep.subr.mxu0 0.0
        %1272 = vmatpush1.msra.mxu0 0.0
        %1273 = vmatprep.subr.mxu0 0.0
        %1274 = vmatpush1.msra.mxu0 0.0
        %1275 = vmatprep.subr.mxu0 0.0
        %1276 = vmatpush1.msra.mxu0 0.0
        %1277 = vmatprep.subr.mxu0 0.0
        %1278 = vmatpush1.msra.mxu0 0.0
        %1279 = vmatprep.subr.mxu0 0.0
        %1280 = vmatpush1.msra.mxu0 0.0
        %1281 = vmatprep.subr.mxu0 0.0
        %1282 = vmatpush1.msra.mxu0 0.0
        %1283 = vmatprep.subr.mxu0 0.0
        %1284 = vmatpush1.msra.mxu0 0.0
        %1285 = vmatprep.subr.mxu0 0.0
        %1286 = vmatpush1.msra.mxu0 0.0
        %1287 = vmatprep.subr.mxu0 0.0
        %1288 = vmatpush1.msra.mxu0 0.0
        %1289 = vmatprep.subr.mxu0 0.0
        %1290 = vmatpush1.msra.mxu0 0.0
        %1291 = vmatprep.subr.mxu0 0.0
        %1292 = vmatpush1.msra.mxu0 0.0
        %1293 = vmatprep.subr.mxu0 0.0
        %1294 = vmatpush1.msra.mxu0 0.0
        %1295 = vmatprep.subr.mxu0 0.0
        %1296 = vmatpush1.msra.mxu0 0.0
        %1297 = vmatprep.subr.mxu0 0.0
        %1298 = vmatpush1.msra.mxu0 0.0
        %1299 = vmatprep.subr.mxu0 0.0
        %1300 = vmatpush1.msra.mxu0 0.0
        %1301 = vmatprep.subr.mxu0 0.0
        %1302 = vmatpush1.msra.mxu0 0.0
        %1303 = vmatprep.subr.mxu0 0.0
        %1304 = vmatpush1.msra.mxu0 0.0
        %1305 = vmatprep.mubr.f32.mxu0 0.0
        %1306 = vmatmul.mubr.f32.gmra.mrb[0].mxu0 %v1239
        %v1307 = vpop.f32.mrb[0].mxu0
        %v1308 = vadd.f32 0.0, %v1307
        %v1309 = vpop.f32.mrb[0].mxu0
        %v1310 = vadd.f32 0.0, %v1309
        %1311 = vdwg.mxu0
        %v1312 = vadd.f32 %v1234, %v1308
        %v1313 = vadd.f32 %v1235, %v1310
        %v1314 = vadd.f32 %v1312, %v687
        %v1315 = vadd.f32 %v1313, %v687
        %s1316 = scalar_lea.vmem %s163, 32 [#allocation3]
        %1317 = vst [vmem:[%s1316] sm:$0xff] %v1314
        %1318 = vst [vmem:[%s1316 + $0x8] sm:$0xff] %v1315
        %s1319 = scalar_lea.vmem %s1, 96
        %v1320 = vld [vmem:[%s1319] sm:$0xff]
        %s1321 = scalar_lea.vmem %s1, 104
        %v1322 = vld [vmem:[%s1321] sm:$0xff]
        %v1324 = vsel %vm368, %v1322, 0
        %1326 = vmatprep.subr.mxu0 %v308
        %1327 = vmatpush1.msra.mxu0 %v307
        %1328 = vmatprep.subr.mxu0 0.0
        %1329 = vmatpush1.msra.mxu0 0.0
        %1330 = vmatprep.subr.mxu0 0.0
        %1331 = vmatpush1.msra.mxu0 0.0
        %1332 = vmatprep.subr.mxu0 0.0
        %1333 = vmatpush1.msra.mxu0 0.0
        %1334 = vmatprep.subr.mxu0 0.0
        %1335 = vmatpush1.msra.mxu0 0.0
        %1336 = vmatprep.subr.mxu0 0.0
        %1337 = vmatpush1.msra.mxu0 0.0
        %1338 = vmatprep.subr.mxu0 0.0
        %1339 = vmatpush1.msra.mxu0 0.0
        %1340 = vmatprep.subr.mxu0 0.0
        %1341 = vmatpush1.msra.mxu0 0.0
        %1342 = vmatprep.subr.mxu0 0.0
        %1343 = vmatpush1.msra.mxu0 0.0
        %1344 = vmatprep.subr.mxu0 0.0
        %1345 = vmatpush1.msra.mxu0 0.0
        %1346 = vmatprep.subr.mxu0 0.0
        %1347 = vmatpush1.msra.mxu0 0.0
        %1348 = vmatprep.subr.mxu0 0.0
        %1349 = vmatpush1.msra.mxu0 0.0
        %1350 = vmatprep.subr.mxu0 0.0
        %1351 = vmatpush1.msra.mxu0 0.0
        %1352 = vmatprep.subr.mxu0 0.0
        %1353 = vmatpush1.msra.mxu0 0.0
        %1354 = vmatprep.subr.mxu0 0.0
        %1355 = vmatpush1.msra.mxu0 0.0
        %1356 = vmatprep.subr.mxu0 0.0
        %1357 = vmatpush1.msra.mxu0 0.0
        %1358 = vmatprep.subr.mxu0 0.0
        %1359 = vmatpush1.msra.mxu0 0.0
        %1360 = vmatprep.subr.mxu0 0.0
        %1361 = vmatpush1.msra.mxu0 0.0
        %1362 = vmatprep.subr.mxu0 0.0
        %1363 = vmatpush1.msra.mxu0 0.0
        %1364 = vmatprep.subr.mxu0 0.0
        %1365 = vmatpush1.msra.mxu0 0.0
        %1366 = vmatprep.subr.mxu0 0.0
        %1367 = vmatpush1.msra.mxu0 0.0
        %1368 = vmatprep.subr.mxu0 0.0
        %1369 = vmatpush1.msra.mxu0 0.0
        %1370 = vmatprep.subr.mxu0 0.0
        %1371 = vmatpush1.msra.mxu0 0.0
        %1372 = vmatprep.subr.mxu0 0.0
        %1373 = vmatpush1.msra.mxu0 0.0
        %1374 = vmatprep.subr.mxu0 0.0
        %1375 = vmatpush1.msra.mxu0 0.0
        %1376 = vmatprep.subr.mxu0 0.0
        %1377 = vmatpush1.msra.mxu0 0.0
        %1378 = vmatprep.subr.mxu0 0.0
        %1379 = vmatpush1.msra.mxu0 0.0
        %1380 = vmatprep.subr.mxu0 0.0
        %1381 = vmatpush1.msra.mxu0 0.0
        %1382 = vmatprep.subr.mxu0 0.0
        %1383 = vmatpush1.msra.mxu0 0.0
        %1384 = vmatprep.subr.mxu0 0.0
        %1385 = vmatpush1.msra.mxu0 0.0
        %1386 = vmatprep.subr.mxu0 0.0
        %1387 = vmatpush1.msra.mxu0 0.0
        %1388 = vmatprep.subr.mxu0 0.0
        %1389 = vmatpush1.msra.mxu0 0.0
        %1390 = vmatprep.mubr.f32.mxu0 0.0
        %1391 = vmatmul.mubr.f32.gmra.mrb[0].mxu0 %v1324
        %v1392 = vpop.f32.mrb[0].mxu0
        %v1393 = vadd.f32 0.0, %v1392
        %v1394 = vpop.f32.mrb[0].mxu0
        %v1395 = vadd.f32 0.0, %v1394
        %1396 = vdwg.mxu0
        %v1398 = vsel %vm368, %v1320, 0
        %1400 = vmatprep.subr.mxu0 %v605
        %1401 = vmatpush1.msra.mxu0 %v604
        %1402 = vmatprep.subr.mxu0 0.0
        %1403 = vmatpush1.msra.mxu0 0.0
        %1404 = vmatprep.subr.mxu0 0.0
        %1405 = vmatpush1.msra.mxu0 0.0
        %1406 = vmatprep.subr.mxu0 0.0
        %1407 = vmatpush1.msra.mxu0 0.0
        %1408 = vmatprep.subr.mxu0 0.0
        %1409 = vmatpush1.msra.mxu0 0.0
        %1410 = vmatprep.subr.mxu0 0.0
        %1411 = vmatpush1.msra.mxu0 0.0
        %1412 = vmatprep.subr.mxu0 0.0
        %1413 = vmatpush1.msra.mxu0 0.0
        %1414 = vmatprep.subr.mxu0 0.0
        %1415 = vmatpush1.msra.mxu0 0.0
        %1416 = vmatprep.subr.mxu0 0.0
        %1417 = vmatpush1.msra.mxu0 0.0
        %1418 = vmatprep.subr.mxu0 0.0
        %1419 = vmatpush1.msra.mxu0 0.0
        %1420 = vmatprep.subr.mxu0 0.0
        %1421 = vmatpush1.msra.mxu0 0.0
        %1422 = vmatprep.subr.mxu0 0.0
        %1423 = vmatpush1.msra.mxu0 0.0
        %1424 = vmatprep.subr.mxu0 0.0
        %1425 = vmatpush1.msra.mxu0 0.0
        %1426 = vmatprep.subr.mxu0 0.0
        %1427 = vmatpush1.msra.mxu0 0.0
        %1428 = vmatprep.subr.mxu0 0.0
        %1429 = vmatpush1.msra.mxu0 0.0
        %1430 = vmatprep.subr.mxu0 0.0
        %1431 = vmatpush1.msra.mxu0 0.0
        %1432 = vmatprep.subr.mxu0 0.0
        %1433 = vmatpush1.msra.mxu0 0.0
        %1434 = vmatprep.subr.mxu0 0.0
        %1435 = vmatpush1.msra.mxu0 0.0
        %1436 = vmatprep.subr.mxu0 0.0
        %1437 = vmatpush1.msra.mxu0 0.0
        %1438 = vmatprep.subr.mxu0 0.0
        %1439 = vmatpush1.msra.mxu0 0.0
        %1440 = vmatprep.subr.mxu0 0.0
        %1441 = vmatpush1.msra.mxu0 0.0
        %1442 = vmatprep.subr.mxu0 0.0
        %1443 = vmatpush1.msra.mxu0 0.0
        %1444 = vmatprep.subr.mxu0 0.0
        %1445 = vmatpush1.msra.mxu0 0.0
        %1446 = vmatprep.subr.mxu0 0.0
        %1447 = vmatpush1.msra.mxu0 0.0
        %1448 = vmatprep.subr.mxu0 0.0
        %1449 = vmatpush1.msra.mxu0 0.0
        %1450 = vmatprep.subr.mxu0 0.0
        %1451 = vmatpush1.msra.mxu0 0.0
        %1452 = vmatprep.subr.mxu0 0.0
        %1453 = vmatpush1.msra.mxu0 0.0
        %1454 = vmatprep.subr.mxu0 0.0
        %1455 = vmatpush1.msra.mxu0 0.0
        %1456 = vmatprep.subr.mxu0 0.0
        %1457 = vmatpush1.msra.mxu0 0.0
        %1458 = vmatprep.subr.mxu0 0.0
        %1459 = vmatpush1.msra.mxu0 0.0
        %1460 = vmatprep.subr.mxu0 0.0
        %1461 = vmatpush1.msra.mxu0 0.0
        %1462 = vmatprep.subr.mxu0 0.0
        %1463 = vmatpush1.msra.mxu0 0.0
        %1464 = vmatprep.mubr.f32.mxu0 0.0
        %1465 = vmatmul.mubr.f32.gmra.mrb[0].mxu0 %v1398
        %v1466 = vpop.f32.mrb[0].mxu0
        %v1467 = vadd.f32 %v1393, %v1466
        %v1468 = vpop.f32.mrb[0].mxu0
        %v1469 = vadd.f32 %v1395, %v1468
        %1470 = vdwg.mxu0
        %s1471 = scalar_lea.vmem %s1, 112
        %v1472 = vld [vmem:[%s1471] sm:$0xff]
        %v1474 = vsel %vm368, %v1472, 0
        %1476 = vmatprep.subr.mxu0 %v344
        %1477 = vmatpush1.msra.mxu0 %v343
        %1478 = vmatprep.subr.mxu0 0.0
        %1479 = vmatpush1.msra.mxu0 0.0
        %1480 = vmatprep.subr.mxu0 0.0
        %1481 = vmatpush1.msra.mxu0 0.0
        %1482 = vmatprep.subr.mxu0 0.0
        %1483 = vmatpush1.msra.mxu0 0.0
        %1484 = vmatprep.subr.mxu0 0.0
        %1485 = vmatpush1.msra.mxu0 0.0
        %1486 = vmatprep.subr.mxu0 0.0
        %1487 = vmatpush1.msra.mxu0 0.0
        %1488 = vmatprep.subr.mxu0 0.0
        %1489 = vmatpush1.msra.mxu0 0.0
        %1490 = vmatprep.subr.mxu0 0.0
        %1491 = vmatpush1.msra.mxu0 0.0
        %1492 = vmatprep.subr.mxu0 0.0
        %1493 = vmatpush1.msra.mxu0 0.0
        %1494 = vmatprep.subr.mxu0 0.0
        %1495 = vmatpush1.msra.mxu0 0.0
        %1496 = vmatprep.subr.mxu0 0.0
        %1497 = vmatpush1.msra.mxu0 0.0
        %1498 = vmatprep.subr.mxu0 0.0
        %1499 = vmatpush1.msra.mxu0 0.0
        %1500 = vmatprep.subr.mxu0 0.0
        %1501 = vmatpush1.msra.mxu0 0.0
        %1502 = vmatprep.subr.mxu0 0.0
        %1503 = vmatpush1.msra.mxu0 0.0
        %1504 = vmatprep.subr.mxu0 0.0
        %1505 = vmatpush1.msra.mxu0 0.0
        %1506 = vmatprep.subr.mxu0 0.0
        %1507 = vmatpush1.msra.mxu0 0.0
        %1508 = vmatprep.subr.mxu0 0.0
        %1509 = vmatpush1.msra.mxu0 0.0
        %1510 = vmatprep.subr.mxu0 0.0
        %1511 = vmatpush1.msra.mxu0 0.0
        %1512 = vmatprep.subr.mxu0 0.0
        %1513 = vmatpush1.msra.mxu0 0.0
        %1514 = vmatprep.subr.mxu0 0.0
        %1515 = vmatpush1.msra.mxu0 0.0
        %1516 = vmatprep.subr.mxu0 0.0
        %1517 = vmatpush1.msra.mxu0 0.0
        %1518 = vmatprep.subr.mxu0 0.0
        %1519 = vmatpush1.msra.mxu0 0.0
        %1520 = vmatprep.subr.mxu0 0.0
        %1521 = vmatpush1.msra.mxu0 0.0
        %1522 = vmatprep.subr.mxu0 0.0
        %1523 = vmatpush1.msra.mxu0 0.0
        %1524 = vmatprep.subr.mxu0 0.0
        %1525 = vmatpush1.msra.mxu0 0.0
        %1526 = vmatprep.subr.mxu0 0.0
        %1527 = vmatpush1.msra.mxu0 0.0
        %1528 = vmatprep.subr.mxu0 0.0
        %1529 = vmatpush1.msra.mxu0 0.0
        %1530 = vmatprep.subr.mxu0 0.0
        %1531 = vmatpush1.msra.mxu0 0.0
        %1532 = vmatprep.subr.mxu0 0.0
        %1533 = vmatpush1.msra.mxu0 0.0
        %1534 = vmatprep.subr.mxu0 0.0
        %1535 = vmatpush1.msra.mxu0 0.0
        %1536 = vmatprep.subr.mxu0 0.0
        %1537 = vmatpush1.msra.mxu0 0.0
        %1538 = vmatprep.subr.mxu0 0.0
        %1539 = vmatpush1.msra.mxu0 0.0
        %1540 = vmatprep.mubr.f32.mxu0 0.0
        %1541 = vmatmul.mubr.f32.gmra.mrb[0].mxu0 %v1474
        %v1542 = vpop.f32.mrb[0].mxu0
        %v1543 = vadd.f32 0.0, %v1542
        %v1544 = vpop.f32.mrb[0].mxu0
        %v1545 = vadd.f32 0.0, %v1544
        %1546 = vdwg.mxu0
        %v1547 = vadd.f32 %v1467, %v1543
        %v1548 = vadd.f32 %v1469, %v1545
        %s1549 = scalar_lea.vmem %s1, 120
        %v1550 = vld [vmem:[%s1549] sm:$0xff]
        %v1552 = vsel %vm368, %v1550, 0
        %1554 = vmatprep.subr.mxu0 %v363
        %1555 = vmatpush1.msra.mxu0 %v362
        %1556 = vmatprep.subr.mxu0 0.0
        %1557 = vmatpush1.msra.mxu0 0.0
        %1558 = vmatprep.subr.mxu0 0.0
        %1559 = vmatpush1.msra.mxu0 0.0
        %1560 = vmatprep.subr.mxu0 0.0
        %1561 = vmatpush1.msra.mxu0 0.0
        %1562 = vmatprep.subr.mxu0 0.0
        %1563 = vmatpush1.msra.mxu0 0.0
        %1564 = vmatprep.subr.mxu0 0.0
        %1565 = vmatpush1.msra.mxu0 0.0
        %1566 = vmatprep.subr.mxu0 0.0
        %1567 = vmatpush1.msra.mxu0 0.0
        %1568 = vmatprep.subr.mxu0 0.0
        %1569 = vmatpush1.msra.mxu0 0.0
        %1570 = vmatprep.subr.mxu0 0.0
        %1571 = vmatpush1.msra.mxu0 0.0
        %1572 = vmatprep.subr.mxu0 0.0
        %1573 = vmatpush1.msra.mxu0 0.0
        %1574 = vmatprep.subr.mxu0 0.0
        %1575 = vmatpush1.msra.mxu0 0.0
        %1576 = vmatprep.subr.mxu0 0.0
        %1577 = vmatpush1.msra.mxu0 0.0
        %1578 = vmatprep.subr.mxu0 0.0
        %1579 = vmatpush1.msra.mxu0 0.0
        %1580 = vmatprep.subr.mxu0 0.0
        %1581 = vmatpush1.msra.mxu0 0.0
        %1582 = vmatprep.subr.mxu0 0.0
        %1583 = vmatpush1.msra.mxu0 0.0
        %1584 = vmatprep.subr.mxu0 0.0
        %1585 = vmatpush1.msra.mxu0 0.0
        %1586 = vmatprep.subr.mxu0 0.0
        %1587 = vmatpush1.msra.mxu0 0.0
        %1588 = vmatprep.subr.mxu0 0.0
        %1589 = vmatpush1.msra.mxu0 0.0
        %1590 = vmatprep.subr.mxu0 0.0
        %1591 = vmatpush1.msra.mxu0 0.0
        %1592 = vmatprep.subr.mxu0 0.0
        %1593 = vmatpush1.msra.mxu0 0.0
        %1594 = vmatprep.subr.mxu0 0.0
        %1595 = vmatpush1.msra.mxu0 0.0
        %1596 = vmatprep.subr.mxu0 0.0
        %1597 = vmatpush1.msra.mxu0 0.0
        %1598 = vmatprep.subr.mxu0 0.0
        %1599 = vmatpush1.msra.mxu0 0.0
        %1600 = vmatprep.subr.mxu0 0.0
        %1601 = vmatpush1.msra.mxu0 0.0
        %1602 = vmatprep.subr.mxu0 0.0
        %1603 = vmatpush1.msra.mxu0 0.0
        %1604 = vmatprep.subr.mxu0 0.0
        %1605 = vmatpush1.msra.mxu0 0.0
        %1606 = vmatprep.subr.mxu0 0.0
        %1607 = vmatpush1.msra.mxu0 0.0
        %1608 = vmatprep.subr.mxu0 0.0
        %1609 = vmatpush1.msra.mxu0 0.0
        %1610 = vmatprep.subr.mxu0 0.0
        %1611 = vmatpush1.msra.mxu0 0.0
        %1612 = vmatprep.subr.mxu0 0.0
        %1613 = vmatpush1.msra.mxu0 0.0
        %1614 = vmatprep.subr.mxu0 0.0
        %1615 = vmatpush1.msra.mxu0 0.0
        %1616 = vmatprep.subr.mxu0 0.0
        %1617 = vmatpush1.msra.mxu0 0.0
        %1618 = vmatprep.mubr.f32.mxu0 0.0
        %1619 = vmatmul.mubr.f32.gmra.mrb[0].mxu0 %v1552
        %v1620 = vpop.f32.mrb[0].mxu0
        %v1621 = vadd.f32 0.0, %v1620
        %v1622 = vpop.f32.mrb[0].mxu0
        %v1623 = vadd.f32 0.0, %v1622
        %1624 = vdwg.mxu0
        %v1625 = vadd.f32 %v1547, %v1621
        %v1626 = vadd.f32 %v1548, %v1623
        %v1627 = vadd.f32 %v1625, %v687
        %v1628 = vadd.f32 %v1626, %v687
        %s1629 = scalar_lea.vmem %s163, 48 [#allocation3]
        %1630 = vst [vmem:[%s1629] sm:$0xff] %v1627
        %1631 = vst [vmem:[%s1629 + $0x8] sm:$0xff] %v1628
        %s1632 = sand.u32 %s93, 1
        %s1633 = scalar_lea.sflag [#allocation4], %s1632
        %s1634 = sand.u32 %s93, 1
        %s1635 = smul.addr %s1634, 64
        %s1636 = scalar_lea.vmem [#allocation3], %s1635
        // Predicated region
        $region33: #{tpu_custom_call.1} parent=31 // pred_check
          %p1637 = pneg %p103
        $region34: #{tpu_custom_call.1} parent=31 // pred_check_branch
          %1639 = sbr.rel (%p1637) target = $region36
        $region35: #{tpu_custom_call.1} parent=31 // pred_region
          %s1641 = ssub.s32 1024, 1024
          %1642 = vsyncadd %s1633, %s1641
          %s1643 = smul.addr %s17, 8
          %s1644 = smul.addr %s1643, 128
          %s1645 = scalar_lea.hbm %s3, %s1644
          %s1646 = sshll.u32 %s1636, 4
          %s1647 = int_to_ptr.vmem [resolvable:$true] %s1646
          %1652 = dma.vmem_to_hbm [thread:$0]  %s1647, 1024, %s1645, %s1633, 256, 256, 16
        $region36: #{tpu_custom_call.1} parent=31 // pred_fallthru
          _
      $region32: #{tpu_custom_call.1} parent=5 // pred_fallthru
        _
      %p1653 = scmp.le.s32.totalorder 2, %s12
      // Predicated region
      $region37: #{tpu_custom_call.1} parent=5 // pred_check
        %p1654 = pneg %p1653
      $region38: #{tpu_custom_call.1} parent=5 // pred_check_branch
        %1656 = sbr.rel (%p1654) target = $region40
      $region39: #{tpu_custom_call.1} parent=5 // pred_region
        %s1657 = ssub.s32 %s12, 2
        // Predicated region
        $region41: #{tpu_custom_call.1} parent=39 // pred_check
          %p1658 = pneg %p109
        $region42: #{tpu_custom_call.1} parent=39 // pred_check_branch
          %1660 = sbr.rel (%p1658) target = $region44
        $region43: #{tpu_custom_call.1} parent=39 // pred_region
          %s1661 = sand.u32 %s94, 1
          %s1662 = scalar_lea.sflag [#allocation4], %s1661
          %s1663 = sand.u32 %s94, 1
          %s1664 = smul.addr %s1663, 64
          %s1665 = scalar_lea.vmem [#allocation3], %s1664
          %1666 = dma.done %s1662, 1024
        $region44: #{tpu_custom_call.1} parent=39 // pred_fallthru
          _
      $region40: #{tpu_custom_call.1} parent=5 // pred_fallthru
        _
    $region6: #{tpu_custom_call.1} parent=1 // loop_footer
      %s16 = sadd.s32 1, %s12
    $region7: #{tpu_custom_call.1} parent=1 // loop_footer_branch
      %11 = sbr.rel target = $region3
    $region8: #{tpu_custom_call.1} parent=1 // loop_exit
      _
    %1667 = vsyncpa [#allocation4], 1
    %s1668 = scalar_lea.sflag [#allocation4], 1
    %1669 = vsyncpa %s1668, 1

</llo_original>
